<compile_context>
chip_gen: v7x
topology: tpu7x:2x2x1
jax: 0.10.0
libtpu: 0.0.40
codegen_flags: <defaults>
</compile_context>

<pallas_src>
import functools
import math

import jax
import jax.numpy as jnp
from jax.experimental import pallas as pl
from jax.experimental.pallas import tpu as pltpu


# ----------------------------- config ---------------------------------------
INPUT_SIZE = 16
D_MODEL = 32
NHEAD = 4
NUM_LAYERS = 2
HEAD_DIM = D_MODEL // NHEAD
DIM_FF = 4 * D_MODEL
LN_EPS = 1e-5
assert NHEAD * HEAD_DIM == D_MODEL

# rows of the packed per-layer bias/LayerNorm vector block (8, 128)
_ROW_BQKV, _ROW_B1, _ROW_BO, _ROW_LN1G, _ROW_LN1B, _ROW_B2, _ROW_LN2G, _ROW_LN2B = range(8)

# lane layout of the packed per-layer weight slab (NUM_LAYERS, 40, 288):
#   rows 0:32  lanes [0:96)    W_qkv (pre-transposed, Q columns pre-scaled)
#   rows 0:32  lanes [128:256) W_1   (pre-transposed)
#   rows 0:32  lanes [256:288) W_o   (pre-transposed)
#   rows 32:40 lanes [0:128)   packed bias / LayerNorm vectors (see _ROW_* above)
_OFF_WQKV = 0
_OFF_W1 = 128
_OFF_WO = 256
_SLAB_ROWS = D_MODEL + 8          # 40
_SLAB_LANES = _OFF_WO + D_MODEL   # 288
assert 3 * D_MODEL <= _OFF_W1 and DIM_FF <= _OFF_WO - _OFF_W1


def _cdiv(a, b):
    return -(-a // b)


def _layer_norm(x, g, b):
    mu = jnp.mean(x, axis=-1, keepdims=True)
    var = jnp.mean((x - mu) ** 2, axis=-1, keepdims=True)
    return (x - mu) * jax.lax.rsqrt(var + LN_EPS) * g + b


# ----------------------------- Pallas kernel --------------------------------
def _transformer_kernel(x_ref, const_ref, mask_ref, slab_ref, w2_ref, out_ref,
                        *, bb, seq):
    rows = bb * seq
    hs = NHEAD * seq

    # ---- embedding + positional encoding (PE/emb-bias passed once, broadcast) ----
    x = x_ref[...].reshape(rows, INPUT_SIZE)                    # leading-dim merge only
    emb_w = const_ref[:INPUT_SIZE, :]                           # (IN, D)
    pe_b = const_ref[INPUT_SIZE:INPUT_SIZE + seq, :]            # (S, D) = PE + emb bias
    h = jnp.dot(x, emb_w, preferred_element_type=jnp.float32)   # (rows, D)
    h = (h.reshape(bb, seq, D_MODEL) + pe_b[None, :, :]).reshape(rows, D_MODEL)

    # static block-diagonal masks (precomputed in the wrapper, loaded once)
    kv_mask = mask_ref[:hs, :D_MODEL]                           # (H*S, D)
    sum_bd = mask_ref[hs:2 * hs, :hs]                           # (H*S, H*S) block-diag ones

    for l in range(NUM_LAYERS):
        wqkv = slab_ref[l, :D_MODEL, _OFF_WQKV:_OFF_WQKV + 3 * D_MODEL]   # (D, 3D)
        w1 = slab_ref[l, :D_MODEL, _OFF_W1:_OFF_W1 + DIM_FF]              # (D, FF)
        wo = slab_ref[l, :D_MODEL, _OFF_WO:_OFF_WO + D_MODEL]             # (D, D)
        vecs = slab_ref[l, D_MODEL:D_MODEL + 8, :128]                     # (8, 128)
        bqkv = vecs[_ROW_BQKV, :3 * D_MODEL]
        b1 = vecs[_ROW_B1, :DIM_FF]
        bo = vecs[_ROW_BO, :D_MODEL]
        ln1_g = vecs[_ROW_LN1G, :D_MODEL]
        ln1_b = vecs[_ROW_LN1B, :D_MODEL]
        b2 = vecs[_ROW_B2, :D_MODEL]
        ln2_g = vecs[_ROW_LN2G, :D_MODEL]
        ln2_b = vecs[_ROW_LN2B, :D_MODEL]

        # ---- multi-head self attention: all heads via block-diagonal K/V ----
        qkv = jnp.dot(h, wqkv, preferred_element_type=jnp.float32) + bqkv  # (rows, 3D)
        qkv3 = qkv.reshape(bb, seq, 3 * D_MODEL)
        q = qkv3[:, :, :D_MODEL]                                           # (bb, S, D)
        k = qkv3[:, :, D_MODEL:2 * D_MODEL]
        v = qkv3[:, :, 2 * D_MODEL:]

        # k_bd[b, h*S+j, d] = k[b, j, d] if d belongs to head h else 0 (same for v)
        k_bd = jnp.concatenate([k] * NHEAD, axis=1) * kv_mask[None]        # (bb, H*S, D)
        v_bd = jnp.concatenate([v] * NHEAD, axis=1) * kv_mask[None]        # (bb, H*S, D)

        # scores for all heads in one batched matmul (K = D_MODEL, N = H*S)
        sc = jnp.einsum('bqd,bkd->bqk', q, k_bd,
                        preferred_element_type=jnp.float32)                # (bb, S, H*S)
        # row-global max subtraction is exact for the per-block softmax
        # (shift invariance); single batched XLU reduce over all rows.
        sc = sc - jnp.max(sc, axis=-1, keepdims=True)
        p = jnp.exp(sc)
        # per-head-block sums via block-diagonal ones matmul (MXU), broadcast in place
        denom = jnp.dot(p.reshape(rows, hs), sum_bd,
                        preferred_element_type=jnp.float32).reshape(bb, seq, hs)
        p = p * pl.reciprocal(denom, approx=True)

        # P @ V for all heads; columns already land in head order -> one W_o matmul
        o = jnp.einsum('bqk,bkd->bqd', p, v_bd,
                       preferred_element_type=jnp.float32)                 # (bb, S, D)
        attn = jnp.dot(o.reshape(rows, D_MODEL), wo,
                       preferred_element_type=jnp.float32) + bo

        # post-norm residual 1
        h = _layer_norm(h + attn, ln1_g, ln1_b)

        # ---- feed-forward ----
        ff = jnp.dot(h, w1, preferred_element_type=jnp.float32) + b1
        ff = jnp.maximum(ff, 0.0)
        ff = jnp.dot(ff, w2_ref[l], preferred_element_type=jnp.float32) + b2

        # post-norm residual 2
        h = _layer_norm(h + ff, ln2_g, ln2_b)

    # lane-dense output: (bb, S*D) rows (256 lanes) instead of a trailing 32-lane dim
    h3 = h.reshape(bb, seq, D_MODEL)
    out_ref[...] = jnp.concatenate([h3[:, s, :] for s in range(seq)], axis=-1)


# ----------------------------- wrapper ---------------------------------------
def _num_tensorcores():
    """1 TensorCore on v2/v3-per-device, v5e, v6e; 2 on megacore chips (v4/v5p/v7x)."""
    try:
        kind = (getattr(jax.devices()[0], "device_kind", "") or "").lower()
    except Exception:
        return 1
    if ("v4" in kind) or ("v5p" in kind) or ("7" in kind):
        return 2
    return 1


def _choose_batch_block(batch, seq, num_cores, max_rows=1024, min_rows_per_core=256):
    """Rows per grid step: as large as possible (the kernel is overhead-bound, not
    VMEM-bound).  Split across TensorCores only on dual-TC chips and only when each
    half still has >= min_rows_per_core rows."""
    bb = min(batch, max(1, max_rows // seq))
    if num_cores >= 2 and batch * seq >= 2 * min_rows_per_core:
        bb = min(bb, _cdiv(batch, 2))
    if bb >= batch:
        return batch                      # single grid step, block == full batch
    bb = _cdiv(bb, 8) * 8                 # keep tiled output blocks sublane-aligned
    return batch if bb >= batch else bb


def _positional_encoding(seq_len, d_model):
    position = jnp.arange(seq_len, dtype=jnp.float32)[:, None]
    div_term = jnp.exp(jnp.arange(0, d_model, 2, dtype=jnp.float32)
                       * (-math.log(10000.0) / d_model))
    pe = jnp.zeros((seq_len, d_model), dtype=jnp.float32)
    pe = pe.at[:, 0::2].set(jnp.sin(position * div_term))
    pe = pe.at[:, 1::2].set(jnp.cos(position * div_term))
    return pe


def _attention_masks(seq):
    """Static block-diagonal masks, computed on the host/XLA side."""
    hs = NHEAD * seq
    r = jnp.arange(hs)[:, None]
    kv_mask = (r // seq == jnp.arange(D_MODEL)[None, :] // HEAD_DIM).astype(jnp.float32)
    sum_bd = (r // seq == jnp.arange(hs)[None, :] // seq).astype(jnp.float32)
    width = max(D_MODEL, hs)
    masks = jnp.zeros((2 * hs, width), jnp.float32)
    masks = masks.at[:hs, :D_MODEL].set(kv_mask)
    masks = masks.at[hs:, :hs].set(sum_bd)
    return masks


def _prepare_kernel_params(p, seq):
    """Pre-transpose weights, fold the attention scale and PE/bias, pack slabs."""
    scale = 1.0 / math.sqrt(HEAD_DIM)

    emb_w_t = p["emb_w"].T                                            # (IN, D)
    pe_b = _positional_encoding(seq, D_MODEL) + p["emb_b"][None, :]   # (S, D)
    const = jnp.concatenate([emb_w_t, pe_b], axis=0).astype(jnp.float32)

    wqkv = jnp.transpose(p["in_proj_w"], (0, 2, 1))                   # (L, D, 3D)
    wqkv = wqkv.at[:, :, :D_MODEL].multiply(scale)                    # fold 1/sqrt(hd)
    wo = jnp.transpose(p["out_proj_w"], (0, 2, 1))                    # (L, D, D)
    w1 = jnp.transpose(p["lin1_w"], (0, 2, 1))                        # (L, D, FF)
    w2 = jnp.transpose(p["lin2_w"], (0, 2, 1))                        # (L, FF, D)

    vec = jnp.zeros((NUM_LAYERS, 8, 128), jnp.float32)
    bqkv = p["in_proj_b"].at[:, :D_MODEL].multiply(scale)
    vec = vec.at[:, _ROW_BQKV, :3 * D_MODEL].set(bqkv)
    vec = vec.at[:, _ROW_B1, :DIM_FF].set(p["lin1_b"])
    vec = vec.at[:, _ROW_BO, :D_MODEL].set(p["out_proj_b"])
    vec = vec.at[:, _ROW_LN1G, :D_MODEL].set(p["ln1_g"])
    vec = vec.at[:, _ROW_LN1B, :D_MODEL].set(p["ln1_b"])
    vec = vec.at[:, _ROW_B2, :D_MODEL].set(p["lin2_b"])
    vec = vec.at[:, _ROW_LN2G, :D_MODEL].set(p["ln2_g"])
    vec = vec.at[:, _ROW_LN2B, :D_MODEL].set(p["ln2_b"])

    slab = jnp.zeros((NUM_LAYERS, _SLAB_ROWS, _SLAB_LANES), jnp.float32)
    slab = slab.at[:, :D_MODEL, _OFF_WQKV:_OFF_WQKV + 3 * D_MODEL].set(wqkv)
    slab = slab.at[:, :D_MODEL, _OFF_W1:_OFF_W1 + DIM_FF].set(w1)
    slab = slab.at[:, :D_MODEL, _OFF_WO:_OFF_WO + D_MODEL].set(wo)
    slab = slab.at[:, D_MODEL:D_MODEL + 8, :128].set(vec)

    masks = _attention_masks(seq)
    return const, masks, slab, w2


def standard_transformer_forward(x, params):
    """x: (B, S, INPUT_SIZE) float32 -> (B, S, D_MODEL) float32."""
    B, S, in_sz = x.shape
    assert in_sz == INPUT_SIZE

    num_cores = _num_tensorcores()
    bb = _choose_batch_block(B, S, num_cores)
    b_pad = _cdiv(B, bb) * bb
    if b_pad != B:
        x = jnp.pad(x, ((0, b_pad - B), (0, 0), (0, 0)))

    const, masks, slab, w2 = _prepare_kernel_params(params, S)
    hs = NHEAD * S
    mask_w = max(D_MODEL, hs)

    kernel = functools.partial(_transformer_kernel, bb=bb, seq=S)

    in_specs = [
        pl.BlockSpec((bb, S, INPUT_SIZE), lambda b: (b, 0, 0)),               # x (batch-folded)
        pl.BlockSpec((INPUT_SIZE + S, D_MODEL), lambda b: (0, 0)),            # emb_w^T | PE+bias
        pl.BlockSpec((2 * hs, mask_w), lambda b: (0, 0)),                     # attention masks
        pl.BlockSpec((NUM_LAYERS, _SLAB_ROWS, _SLAB_LANES), lambda b: (0, 0, 0)),  # weight slab
        pl.BlockSpec((NUM_LAYERS, DIM_FF, D_MODEL), lambda b: (0, 0, 0)),     # w2 (pre-T)
    ]

    out = pl.pallas_call(
        kernel,
        out_shape=jax.ShapeDtypeStruct((b_pad, S * D_MODEL), jnp.float32),
        grid_spec=pltpu.PrefetchScalarGridSpec(
            num_scalar_prefetch=0,
            grid=(b_pad // bb,),
            in_specs=in_specs,
            out_specs=pl.BlockSpec((bb, S * D_MODEL), lambda b: (b, 0)),
        ),
        compiler_params=pltpu.CompilerParams(
            dimension_semantics=("parallel",)),
    )(x, const, masks, slab, w2)

    return out[:B].reshape(B, S, D_MODEL)


# ----------------------------- reference / init -------------------------------
def _init_params(key):
    """Parameters in PyTorch layout (Linear weight = (out, in))."""
    ks = jax.random.split(key, 10)
    s = 0.05
    return {
        "emb_w": s * jax.random.normal(ks[0], (D_MODEL, INPUT_SIZE), jnp.float32),
        "emb_b": s * jax.random.normal(ks[1], (D_MODEL,), jnp.float32),
        "in_proj_w": s * jax.random.normal(ks[2], (NUM_LAYERS, 3 * D_MODEL, D_MODEL), jnp.float32),
        "in_proj_b": s * jax.random.normal(ks[3], (NUM_LAYERS, 3 * D_MODEL), jnp.float32),
        "out_proj_w": s * jax.random.normal(ks[4], (NUM_LAYERS, D_MODEL, D_MODEL), jnp.float32),
        "out_proj_b": s * jax.random.normal(ks[5], (NUM_LAYERS, D_MODEL), jnp.float32),
        "ln1_g": jnp.ones((NUM_LAYERS, D_MODEL), jnp.float32),
        "ln1_b": jnp.zeros((NUM_LAYERS, D_MODEL), jnp.float32),
        "lin1_w": s * jax.random.normal(ks[6], (NUM_LAYERS, DIM_FF, D_MODEL), jnp.float32),
        "lin1_b": s * jax.random.normal(ks[7], (NUM_LAYERS, DIM_FF), jnp.float32),
        "lin2_w": s * jax.random.normal(ks[8], (NUM_LAYERS, D_MODEL, DIM_FF), jnp.float32),
        "lin2_b": s * jax.random.normal(ks[9], (NUM_LAYERS, D_MODEL), jnp.float32),
        "ln2_g": jnp.ones((NUM_LAYERS, D_MODEL), jnp.float32),
        "ln2_b": jnp.zeros((NUM_LAYERS, D_MODEL), jnp.float32),
    }


def _reference_forward(x, p):
    """Pure-JAX reference matching PyTorch eval-mode semantics."""
    pe = _positional_encoding(x.shape[1], D_MODEL)
    scale = 1.0 / math.sqrt(HEAD_DIM)

    def per_example(xe):                                   # (S, INPUT_SIZE)
        h = xe @ p["emb_w"].T + p["emb_b"]
        h = h + pe
        for l in range(NUM_LAYERS):
            qkv = h @ p["in_proj_w"][l].T + p["in_proj_b"][l]
            q, k, v = jnp.split(qkv, 3, axis=-1)
            outs = []
            for hd in range(NHEAD):
                sl = slice(hd * HEAD_DIM, (hd + 1) * HEAD_DIM)
                sc = (q[:, sl] @ k[:, sl].T) * scale
                a = jax.nn.softmax(sc, axis=-1)
                outs.append(a @ v[:, sl])
            attn = jnp.concatenate(outs, axis=-1) @ p["out_proj_w"][l].T + p["out_proj_b"][l]
            h = _layer_norm(h + attn, p["ln1_g"][l], p["ln1_b"][l])
            ff = jnp.maximum(h @ p["lin1_w"][l].T + p["lin1_b"][l], 0.0)
            ff = ff @ p["lin2_w"][l].T + p["lin2_b"][l]
            h = _layer_norm(h + ff, p["ln2_g"][l], p["ln2_b"][l])
        return h

    return jax.vmap(per_example)(x)


# ----------------------------- main ------------------------------------------
if __name__ == "__main__":
    key = jax.random.PRNGKey(0)
    k_x, k_p = jax.random.split(key)
    params = _init_params(k_p)

    # small shape from the spec (batch=2, seq=8, input=16) plus a larger batch to
    # exercise the bigger batch-folded blocks (still a single grid step on 1-TC chips).
    for B, S in [(2, 8), (32, 8)]:
        x = jax.random.normal(jax.random.fold_in(k_x, B), (B, S, INPUT_SIZE), jnp.float32)
        out = jax.block_until_ready(standard_transformer_forward(x, params))
        ref = jax.block_until_ready(_reference_forward(x, params))
        assert out.shape == (B, S, D_MODEL)
        err = float(jnp.max(jnp.abs(out - ref)))
        # tolerance allows for pl.reciprocal(approx=True) in the softmax denominator
        assert err < 2e-3, f"mismatch vs pure-JAX reference (B={B}): {err}"

    print("KERNEL_OK")
</pallas_src>

<mosaic_0001>
module attributes {stable_mosaic.version = 11 : i64} {
  func.func @_transformer_kernel(%arg0: i32, %arg1: memref<2x8x16xf32, #tpu.memory_space<vmem>>, %arg2: memref<24x32xf32, #tpu.memory_space<vmem>>, %arg3: memref<64x32xf32, #tpu.memory_space<vmem>>, %arg4: memref<2x40x288xf32, #tpu.memory_space<vmem>>, %arg5: memref<2x128x32xf32, #tpu.memory_space<vmem>>, %arg6: memref<2x256xf32, #tpu.memory_space<vmem>>) attributes {dimension_semantics = [#tpu.dimension_semantics<parallel>], iteration_bounds = array<i64: 1>, scalar_prefetch = 0 : i64, scratch_operands = 0 : i64, tpu.core_type = #tpu.core_type<tc>, window_params = [{transform_indices = @transform_0, window_bounds = array<i64: 2, 8, 16>}, {pipeline_mode = #tpu.pipeline_mode<synchronous>, transform_indices = @transform_1, window_bounds = array<i64: 24, 32>}, {pipeline_mode = #tpu.pipeline_mode<synchronous>, transform_indices = @transform_2, window_bounds = array<i64: 64, 32>}, {pipeline_mode = #tpu.pipeline_mode<synchronous>, transform_indices = @transform_3, window_bounds = array<i64: 2, 40, 288>}, {pipeline_mode = #tpu.pipeline_mode<synchronous>, transform_indices = @transform_4, window_bounds = array<i64: 2, 128, 32>}, {transform_indices = @transform_5, window_bounds = array<i64: 2, 256>}]} {
    %c0 = arith.constant 0 : index
    %c0_0 = arith.constant 0 : index
    %c0_1 = arith.constant 0 : index
    %0 = vector.load %arg1[%c0, %c0_0, %c0_1] : memref<2x8x16xf32, #tpu.memory_space<vmem>>, vector<2x8x16xf32>
    %1 = vector.shape_cast %0 : vector<2x8x16xf32> to vector<16x16xf32>
    %c0_2 = arith.constant 0 : index
    %c0_3 = arith.constant 0 : index
    %2 = vector.load %arg2[%c0_2, %c0_3] : memref<24x32xf32, #tpu.memory_space<vmem>>, vector<16x32xf32>
    %c16 = arith.constant 16 : index
    %c0_4 = arith.constant 0 : index
    %3 = vector.load %arg2[%c16, %c0_4] : memref<24x32xf32, #tpu.memory_space<vmem>>, vector<8x32xf32>
    %cst = arith.constant dense<0.000000e+00> : vector<16x32xf32>
    %4 = tpu.matmul %1, %2, %cst {dimension_numbers = #tpu.dot_dimension_numbers<[1], [0], [0], [1], [0, 0, 1, 1], [], []>} : vector<16x16xf32>, vector<16x32xf32>, vector<16x32xf32> -> vector<16x32xf32>
    %5 = vector.shape_cast %4 : vector<16x32xf32> to vector<2x8x32xf32>
    %6 = vector.shape_cast %3 : vector<8x32xf32> to vector<1x8x32xf32>
    %7 = vector.broadcast %6 : vector<1x8x32xf32> to vector<2x8x32xf32>
    %8 = arith.addf %5, %7 : vector<2x8x32xf32>
    %9 = vector.shape_cast %8 : vector<2x8x32xf32> to vector<16x32xf32>
    %c0_5 = arith.constant 0 : index
    %c0_6 = arith.constant 0 : index
    %10 = vector.load %arg3[%c0_5, %c0_6] : memref<64x32xf32, #tpu.memory_space<vmem>>, vector<32x32xf32>
    %c32 = arith.constant 32 : index
    %c0_7 = arith.constant 0 : index
    %11 = vector.load %arg3[%c32, %c0_7] : memref<64x32xf32, #tpu.memory_space<vmem>>, vector<32x32xf32>
    %c0_8 = arith.constant 0 : index
    %c0_9 = arith.constant 0 : index
    %c0_10 = arith.constant 0 : index
    %12 = vector.load %arg4[%c0_8, %c0_9, %c0_10] : memref<2x40x288xf32, #tpu.memory_space<vmem>>, vector<1x32x96xf32>
    %13 = vector.shape_cast %12 : vector<1x32x96xf32> to vector<32x96xf32>
    %c0_11 = arith.constant 0 : index
    %c0_12 = arith.constant 0 : index
    %c128 = arith.constant 128 : index
    %14 = vector.load %arg4[%c0_11, %c0_12, %c128] : memref<2x40x288xf32, #tpu.memory_space<vmem>>, vector<1x32x128xf32>
    %15 = vector.shape_cast %14 : vector<1x32x128xf32> to vector<32x128xf32>
    %c0_13 = arith.constant 0 : index
    %c0_14 = arith.constant 0 : index
    %c256 = arith.constant 256 : index
    %16 = vector.load %arg4[%c0_13, %c0_14, %c256] : memref<2x40x288xf32, #tpu.memory_space<vmem>>, vector<1x32x32xf32>
    %17 = vector.shape_cast %16 : vector<1x32x32xf32> to vector<32x32xf32>
    %c0_15 = arith.constant 0 : index
    %c32_16 = arith.constant 32 : index
    %c0_17 = arith.constant 0 : index
    %18 = vector.load %arg4[%c0_15, %c32_16, %c0_17] : memref<2x40x288xf32, #tpu.memory_space<vmem>>, vector<1x8x128xf32>
    %19 = vector.shape_cast %18 : vector<1x8x128xf32> to vector<8x128xf32>
    %20 = vector.extract_strided_slice %19 {offsets = [0, 0], sizes = [1, 96], strides = [1, 1]} : vector<8x128xf32> to vector<1x96xf32>
    %21 = vector.shape_cast %20 : vector<1x96xf32> to vector<96xf32>
    %22 = vector.extract_strided_slice %19 {offsets = [1, 0], sizes = [1, 128], strides = [1, 1]} : vector<8x128xf32> to vector<1x128xf32>
    %23 = vector.shape_cast %22 : vector<1x128xf32> to vector<128xf32>
    %24 = vector.extract_strided_slice %19 {offsets = [2, 0], sizes = [1, 32], strides = [1, 1]} : vector<8x128xf32> to vector<1x32xf32>
    %25 = vector.shape_cast %24 : vector<1x32xf32> to vector<32xf32>
    %26 = vector.extract_strided_slice %19 {offsets = [3, 0], sizes = [1, 32], strides = [1, 1]} : vector<8x128xf32> to vector<1x32xf32>
    %27 = vector.shape_cast %26 : vector<1x32xf32> to vector<32xf32>
    %28 = vector.extract_strided_slice %19 {offsets = [4, 0], sizes = [1, 32], strides = [1, 1]} : vector<8x128xf32> to vector<1x32xf32>
    %29 = vector.shape_cast %28 : vector<1x32xf32> to vector<32xf32>
    %30 = vector.extract_strided_slice %19 {offsets = [5, 0], sizes = [1, 32], strides = [1, 1]} : vector<8x128xf32> to vector<1x32xf32>
    %31 = vector.shape_cast %30 : vector<1x32xf32> to vector<32xf32>
    %32 = vector.extract_strided_slice %19 {offsets = [6, 0], sizes = [1, 32], strides = [1, 1]} : vector<8x128xf32> to vector<1x32xf32>
    %33 = vector.shape_cast %32 : vector<1x32xf32> to vector<32xf32>
    %34 = vector.extract_strided_slice %19 {offsets = [7, 0], sizes = [1, 32], strides = [1, 1]} : vector<8x128xf32> to vector<1x32xf32>
    %35 = vector.shape_cast %34 : vector<1x32xf32> to vector<32xf32>
    %cst_18 = arith.constant dense<0.000000e+00> : vector<16x96xf32>
    %36 = tpu.matmul %9, %13, %cst_18 {dimension_numbers = #tpu.dot_dimension_numbers<[1], [0], [0], [1], [0, 0, 1, 1], [], []>} : vector<16x32xf32>, vector<32x96xf32>, vector<16x96xf32> -> vector<16x96xf32>
    %37 = vector.shape_cast %21 : vector<96xf32> to vector<1x96xf32>
    %38 = vector.broadcast %37 : vector<1x96xf32> to vector<16x96xf32>
    %39 = arith.addf %36, %38 : vector<16x96xf32>
    %40 = vector.shape_cast %39 : vector<16x96xf32> to vector<2x8x96xf32>
    %41 = vector.extract_strided_slice %40 {offsets = [0, 0, 0], sizes = [2, 8, 32], strides = [1, 1, 1]} : vector<2x8x96xf32> to vector<2x8x32xf32>
    %42 = vector.extract_strided_slice %40 {offsets = [0, 0, 32], sizes = [2, 8, 32], strides = [1, 1, 1]} : vector<2x8x96xf32> to vector<2x8x32xf32>
    %43 = vector.extract_strided_slice %40 {offsets = [0, 0, 64], sizes = [2, 8, 32], strides = [1, 1, 1]} : vector<2x8x96xf32> to vector<2x8x32xf32>
    %44 = tpu.concatenate %42, %42, %42, %42 in 1 : vector<2x8x32xf32>, vector<2x8x32xf32>, vector<2x8x32xf32>, vector<2x8x32xf32> -> vector<2x32x32xf32>
    %45 = vector.shape_cast %10 : vector<32x32xf32> to vector<1x32x32xf32>
    %46 = vector.broadcast %45 : vector<1x32x32xf32> to vector<2x32x32xf32>
    %47 = arith.mulf %44, %46 : vector<2x32x32xf32>
    %48 = tpu.concatenate %43, %43, %43, %43 in 1 : vector<2x8x32xf32>, vector<2x8x32xf32>, vector<2x8x32xf32>, vector<2x8x32xf32> -> vector<2x32x32xf32>
    %49 = vector.shape_cast %10 : vector<32x32xf32> to vector<1x32x32xf32>
    %50 = vector.broadcast %49 : vector<1x32x32xf32> to vector<2x32x32xf32>
    %51 = arith.mulf %48, %50 : vector<2x32x32xf32>
    "tpu.trace_start"() <{level = 10 : i32, message = "bqd,bkd->bqk"}> : () -> ()
    %cst_19 = arith.constant dense<0.000000e+00> : vector<2x8x32xf32>
    %52 = tpu.matmul %41, %47, %cst_19 {dimension_numbers = #tpu.dot_dimension_numbers<[2], [2], [1], [1], [0, 0, 0, 1, 1, 1], [0], [0]>} : vector<2x8x32xf32>, vector<2x32x32xf32>, vector<2x8x32xf32> -> vector<2x8x32xf32>
    "tpu.trace_stop"() : () -> ()
    %cst_20 = arith.constant dense<0xFF800000> : vector<2x8xf32>
    %53 = vector.multi_reduction <maximumf>, %52, %cst_20 [2] : vector<2x8x32xf32> to vector<2x8xf32>
    %54 = vector.shape_cast %53 : vector<2x8xf32> to vector<2x8x1xf32>
    %55 = vector.broadcast %54 : vector<2x8x1xf32> to vector<2x8x32xf32>
    %56 = arith.subf %52, %55 : vector<2x8x32xf32>
    %57 = math.exp %56 : vector<2x8x32xf32>
    %58 = vector.shape_cast %57 : vector<2x8x32xf32> to vector<16x32xf32>
    %cst_21 = arith.constant dense<0.000000e+00> : vector<16x32xf32>
    %59 = tpu.matmul %58, %11, %cst_21 {dimension_numbers = #tpu.dot_dimension_numbers<[1], [0], [0], [1], [0, 0, 1, 1], [], []>} : vector<16x32xf32>, vector<32x32xf32>, vector<16x32xf32> -> vector<16x32xf32>
    %60 = vector.shape_cast %59 : vector<16x32xf32> to vector<2x8x32xf32>
    %61 = tpu.reciprocal %60 {approx = true} : vector<2x8x32xf32> -> vector<2x8x32xf32>
    %62 = arith.mulf %57, %61 : vector<2x8x32xf32>
    "tpu.trace_start"() <{level = 10 : i32, message = "bqk,bkd->bqd"}> : () -> ()
    %cst_22 = arith.constant dense<0.000000e+00> : vector<2x8x32xf32>
    %63 = tpu.matmul %62, %51, %cst_22 {dimension_numbers = #tpu.dot_dimension_numbers<[2], [1], [1], [2], [0, 0, 0, 1, 1, 2], [0], [0]>} : vector<2x8x32xf32>, vector<2x32x32xf32>, vector<2x8x32xf32> -> vector<2x8x32xf32>
    "tpu.trace_stop"() : () -> ()
    %64 = vector.shape_cast %63 : vector<2x8x32xf32> to vector<16x32xf32>
    %cst_23 = arith.constant dense<0.000000e+00> : vector<16x32xf32>
    %65 = tpu.matmul %64, %17, %cst_23 {dimension_numbers = #tpu.dot_dimension_numbers<[1], [0], [0], [1], [0, 0, 1, 1], [], []>} : vector<16x32xf32>, vector<32x32xf32>, vector<16x32xf32> -> vector<16x32xf32>
    %66 = vector.shape_cast %25 : vector<32xf32> to vector<1x32xf32>
    %67 = vector.broadcast %66 : vector<1x32xf32> to vector<16x32xf32>
    %68 = arith.addf %65, %67 : vector<16x32xf32>
    %69 = arith.addf %9, %68 : vector<16x32xf32>
    %cst_24 = arith.constant dense<0.000000e+00> : vector<16xf32>
    %70 = vector.multi_reduction <add>, %69, %cst_24 [1] : vector<16x32xf32> to vector<16xf32>
    %71 = vector.shape_cast %70 : vector<16xf32> to vector<16x1xf32>
    %cst_25 = arith.constant 3.200000e+01 : f32
    %72 = vector.broadcast %cst_25 : f32 to vector<16x1xf32>
    %73 = arith.divf %71, %72 : vector<16x1xf32>
    %74 = vector.broadcast %73 : vector<16x1xf32> to vector<16x32xf32>
    %75 = arith.subf %69, %74 : vector<16x32xf32>
    %76 = arith.mulf %75, %75 : vector<16x32xf32>
    %cst_26 = arith.constant dense<0.000000e+00> : vector<16xf32>
    %77 = vector.multi_reduction <add>, %76, %cst_26 [1] : vector<16x32xf32> to vector<16xf32>
    %78 = vector.shape_cast %77 : vector<16xf32> to vector<16x1xf32>
    %cst_27 = arith.constant 3.200000e+01 : f32
    %79 = vector.broadcast %cst_27 : f32 to vector<16x1xf32>
    %80 = arith.divf %78, %79 : vector<16x1xf32>
    %81 = vector.broadcast %73 : vector<16x1xf32> to vector<16x32xf32>
    %82 = arith.subf %69, %81 : vector<16x32xf32>
    %cst_28 = arith.constant 9.99999974E-6 : f32
    %83 = vector.broadcast %cst_28 : f32 to vector<16x1xf32>
    %84 = arith.addf %80, %83 : vector<16x1xf32>
    %85 = math.rsqrt %84 : vector<16x1xf32>
    %86 = vector.broadcast %85 : vector<16x1xf32> to vector<16x32xf32>
    %87 = arith.mulf %82, %86 : vector<16x32xf32>
    %88 = vector.shape_cast %27 : vector<32xf32> to vector<1x32xf32>
    %89 = vector.broadcast %88 : vector<1x32xf32> to vector<16x32xf32>
    %90 = arith.mulf %87, %89 : vector<16x32xf32>
    %91 = vector.shape_cast %29 : vector<32xf32> to vector<1x32xf32>
    %92 = vector.broadcast %91 : vector<1x32xf32> to vector<16x32xf32>
    %93 = arith.addf %90, %92 : vector<16x32xf32>
    %cst_29 = arith.constant dense<0.000000e+00> : vector<16x128xf32>
    %94 = tpu.matmul %93, %15, %cst_29 {dimension_numbers = #tpu.dot_dimension_numbers<[1], [0], [0], [1], [0, 0, 1, 1], [], []>} : vector<16x32xf32>, vector<32x128xf32>, vector<16x128xf32> -> vector<16x128xf32>
    %95 = vector.shape_cast %23 : vector<128xf32> to vector<1x128xf32>
    %96 = vector.broadcast %95 : vector<1x128xf32> to vector<16x128xf32>
    %97 = arith.addf %94, %96 : vector<16x128xf32>
    %cst_30 = arith.constant 0.000000e+00 : f32
    %98 = vector.broadcast %cst_30 : f32 to vector<16x128xf32>
    %99 = arith.maximumf %97, %98 : vector<16x128xf32>
    %c0_31 = arith.constant 0 : index
    %c0_32 = arith.constant 0 : index
    %c0_33 = arith.constant 0 : index
    %100 = vector.load %arg5[%c0_31, %c0_32, %c0_33] : memref<2x128x32xf32, #tpu.memory_space<vmem>>, vector<1x128x32xf32>
    %101 = vector.shape_cast %100 : vector<1x128x32xf32> to vector<128x32xf32>
    %cst_34 = arith.constant dense<0.000000e+00> : vector<16x32xf32>
    %102 = tpu.matmul %99, %101, %cst_34 {dimension_numbers = #tpu.dot_dimension_numbers<[1], [0], [0], [1], [0, 0, 1, 1], [], []>} : vector<16x128xf32>, vector<128x32xf32>, vector<16x32xf32> -> vector<16x32xf32>
    %103 = vector.shape_cast %31 : vector<32xf32> to vector<1x32xf32>
    %104 = vector.broadcast %103 : vector<1x32xf32> to vector<16x32xf32>
    %105 = arith.addf %102, %104 : vector<16x32xf32>
    %106 = arith.addf %93, %105 : vector<16x32xf32>
    %cst_35 = arith.constant dense<0.000000e+00> : vector<16xf32>
    %107 = vector.multi_reduction <add>, %106, %cst_35 [1] : vector<16x32xf32> to vector<16xf32>
    %108 = vector.shape_cast %107 : vector<16xf32> to vector<16x1xf32>
    %cst_36 = arith.constant 3.200000e+01 : f32
    %109 = vector.broadcast %cst_36 : f32 to vector<16x1xf32>
    %110 = arith.divf %108, %109 : vector<16x1xf32>
    %111 = vector.broadcast %110 : vector<16x1xf32> to vector<16x32xf32>
    %112 = arith.subf %106, %111 : vector<16x32xf32>
    %113 = arith.mulf %112, %112 : vector<16x32xf32>
    %cst_37 = arith.constant dense<0.000000e+00> : vector<16xf32>
    %114 = vector.multi_reduction <add>, %113, %cst_37 [1] : vector<16x32xf32> to vector<16xf32>
    %115 = vector.shape_cast %114 : vector<16xf32> to vector<16x1xf32>
    %cst_38 = arith.constant 3.200000e+01 : f32
    %116 = vector.broadcast %cst_38 : f32 to vector<16x1xf32>
    %117 = arith.divf %115, %116 : vector<16x1xf32>
    %118 = vector.broadcast %110 : vector<16x1xf32> to vector<16x32xf32>
    %119 = arith.subf %106, %118 : vector<16x32xf32>
    %cst_39 = arith.constant 9.99999974E-6 : f32
    %120 = vector.broadcast %cst_39 : f32 to vector<16x1xf32>
    %121 = arith.addf %117, %120 : vector<16x1xf32>
    %122 = math.rsqrt %121 : vector<16x1xf32>
    %123 = vector.broadcast %122 : vector<16x1xf32> to vector<16x32xf32>
    %124 = arith.mulf %119, %123 : vector<16x32xf32>
    %125 = vector.shape_cast %33 : vector<32xf32> to vector<1x32xf32>
    %126 = vector.broadcast %125 : vector<1x32xf32> to vector<16x32xf32>
    %127 = arith.mulf %124, %126 : vector<16x32xf32>
    %128 = vector.shape_cast %35 : vector<32xf32> to vector<1x32xf32>
    %129 = vector.broadcast %128 : vector<1x32xf32> to vector<16x32xf32>
    %130 = arith.addf %127, %129 : vector<16x32xf32>
    %c1 = arith.constant 1 : index
    %c0_40 = arith.constant 0 : index
    %c0_41 = arith.constant 0 : index
    %131 = vector.load %arg4[%c1, %c0_40, %c0_41] : memref<2x40x288xf32, #tpu.memory_space<vmem>>, vector<1x32x96xf32>
    %132 = vector.shape_cast %131 : vector<1x32x96xf32> to vector<32x96xf32>
    %c1_42 = arith.constant 1 : index
    %c0_43 = arith.constant 0 : index
    %c128_44 = arith.constant 128 : index
    %133 = vector.load %arg4[%c1_42, %c0_43, %c128_44] : memref<2x40x288xf32, #tpu.memory_space<vmem>>, vector<1x32x128xf32>
    %134 = vector.shape_cast %133 : vector<1x32x128xf32> to vector<32x128xf32>
    %c1_45 = arith.constant 1 : index
    %c0_46 = arith.constant 0 : index
    %c256_47 = arith.constant 256 : index
    %135 = vector.load %arg4[%c1_45, %c0_46, %c256_47] : memref<2x40x288xf32, #tpu.memory_space<vmem>>, vector<1x32x32xf32>
    %136 = vector.shape_cast %135 : vector<1x32x32xf32> to vector<32x32xf32>
    %c1_48 = arith.constant 1 : index
    %c32_49 = arith.constant 32 : index
    %c0_50 = arith.constant 0 : index
    %137 = vector.load %arg4[%c1_48, %c32_49, %c0_50] : memref<2x40x288xf32, #tpu.memory_space<vmem>>, vector<1x8x128xf32>
    %138 = vector.shape_cast %137 : vector<1x8x128xf32> to vector<8x128xf32>
    %139 = vector.extract_strided_slice %138 {offsets = [0, 0], sizes = [1, 96], strides = [1, 1]} : vector<8x128xf32> to vector<1x96xf32>
    %140 = vector.shape_cast %139 : vector<1x96xf32> to vector<96xf32>
    %141 = vector.extract_strided_slice %138 {offsets = [1, 0], sizes = [1, 128], strides = [1, 1]} : vector<8x128xf32> to vector<1x128xf32>
    %142 = vector.shape_cast %141 : vector<1x128xf32> to vector<128xf32>
    %143 = vector.extract_strided_slice %138 {offsets = [2, 0], sizes = [1, 32], strides = [1, 1]} : vector<8x128xf32> to vector<1x32xf32>
    %144 = vector.shape_cast %143 : vector<1x32xf32> to vector<32xf32>
    %145 = vector.extract_strided_slice %138 {offsets = [3, 0], sizes = [1, 32], strides = [1, 1]} : vector<8x128xf32> to vector<1x32xf32>
    %146 = vector.shape_cast %145 : vector<1x32xf32> to vector<32xf32>
    %147 = vector.extract_strided_slice %138 {offsets = [4, 0], sizes = [1, 32], strides = [1, 1]} : vector<8x128xf32> to vector<1x32xf32>
    %148 = vector.shape_cast %147 : vector<1x32xf32> to vector<32xf32>
    %149 = vector.extract_strided_slice %138 {offsets = [5, 0], sizes = [1, 32], strides = [1, 1]} : vector<8x128xf32> to vector<1x32xf32>
    %150 = vector.shape_cast %149 : vector<1x32xf32> to vector<32xf32>
    %151 = vector.extract_strided_slice %138 {offsets = [6, 0], sizes = [1, 32], strides = [1, 1]} : vector<8x128xf32> to vector<1x32xf32>
    %152 = vector.shape_cast %151 : vector<1x32xf32> to vector<32xf32>
    %153 = vector.extract_strided_slice %138 {offsets = [7, 0], sizes = [1, 32], strides = [1, 1]} : vector<8x128xf32> to vector<1x32xf32>
    %154 = vector.shape_cast %153 : vector<1x32xf32> to vector<32xf32>
    %cst_51 = arith.constant dense<0.000000e+00> : vector<16x96xf32>
    %155 = tpu.matmul %130, %132, %cst_51 {dimension_numbers = #tpu.dot_dimension_numbers<[1], [0], [0], [1], [0, 0, 1, 1], [], []>} : vector<16x32xf32>, vector<32x96xf32>, vector<16x96xf32> -> vector<16x96xf32>
    %156 = vector.shape_cast %140 : vector<96xf32> to vector<1x96xf32>
    %157 = vector.broadcast %156 : vector<1x96xf32> to vector<16x96xf32>
    %158 = arith.addf %155, %157 : vector<16x96xf32>
    %159 = vector.shape_cast %158 : vector<16x96xf32> to vector<2x8x96xf32>
    %160 = vector.extract_strided_slice %159 {offsets = [0, 0, 0], sizes = [2, 8, 32], strides = [1, 1, 1]} : vector<2x8x96xf32> to vector<2x8x32xf32>
    %161 = vector.extract_strided_slice %159 {offsets = [0, 0, 32], sizes = [2, 8, 32], strides = [1, 1, 1]} : vector<2x8x96xf32> to vector<2x8x32xf32>
    %162 = vector.extract_strided_slice %159 {offsets = [0, 0, 64], sizes = [2, 8, 32], strides = [1, 1, 1]} : vector<2x8x96xf32> to vector<2x8x32xf32>
    %163 = tpu.concatenate %161, %161, %161, %161 in 1 : vector<2x8x32xf32>, vector<2x8x32xf32>, vector<2x8x32xf32>, vector<2x8x32xf32> -> vector<2x32x32xf32>
    %164 = vector.shape_cast %10 : vector<32x32xf32> to vector<1x32x32xf32>
    %165 = vector.broadcast %164 : vector<1x32x32xf32> to vector<2x32x32xf32>
    %166 = arith.mulf %163, %165 : vector<2x32x32xf32>
    %167 = tpu.concatenate %162, %162, %162, %162 in 1 : vector<2x8x32xf32>, vector<2x8x32xf32>, vector<2x8x32xf32>, vector<2x8x32xf32> -> vector<2x32x32xf32>
    %168 = vector.shape_cast %10 : vector<32x32xf32> to vector<1x32x32xf32>
    %169 = vector.broadcast %168 : vector<1x32x32xf32> to vector<2x32x32xf32>
    %170 = arith.mulf %167, %169 : vector<2x32x32xf32>
    "tpu.trace_start"() <{level = 10 : i32, message = "bqd,bkd->bqk"}> : () -> ()
    %cst_52 = arith.constant dense<0.000000e+00> : vector<2x8x32xf32>
    %171 = tpu.matmul %160, %166, %cst_52 {dimension_numbers = #tpu.dot_dimension_numbers<[2], [2], [1], [1], [0, 0, 0, 1, 1, 1], [0], [0]>} : vector<2x8x32xf32>, vector<2x32x32xf32>, vector<2x8x32xf32> -> vector<2x8x32xf32>
    "tpu.trace_stop"() : () -> ()
    %cst_53 = arith.constant dense<0xFF800000> : vector<2x8xf32>
    %172 = vector.multi_reduction <maximumf>, %171, %cst_53 [2] : vector<2x8x32xf32> to vector<2x8xf32>
    %173 = vector.shape_cast %172 : vector<2x8xf32> to vector<2x8x1xf32>
    %174 = vector.broadcast %173 : vector<2x8x1xf32> to vector<2x8x32xf32>
    %175 = arith.subf %171, %174 : vector<2x8x32xf32>
    %176 = math.exp %175 : vector<2x8x32xf32>
    %177 = vector.shape_cast %176 : vector<2x8x32xf32> to vector<16x32xf32>
    %cst_54 = arith.constant dense<0.000000e+00> : vector<16x32xf32>
    %178 = tpu.matmul %177, %11, %cst_54 {dimension_numbers = #tpu.dot_dimension_numbers<[1], [0], [0], [1], [0, 0, 1, 1], [], []>} : vector<16x32xf32>, vector<32x32xf32>, vector<16x32xf32> -> vector<16x32xf32>
    %179 = vector.shape_cast %178 : vector<16x32xf32> to vector<2x8x32xf32>
    %180 = tpu.reciprocal %179 {approx = true} : vector<2x8x32xf32> -> vector<2x8x32xf32>
    %181 = arith.mulf %176, %180 : vector<2x8x32xf32>
    "tpu.trace_start"() <{level = 10 : i32, message = "bqk,bkd->bqd"}> : () -> ()
    %cst_55 = arith.constant dense<0.000000e+00> : vector<2x8x32xf32>
    %182 = tpu.matmul %181, %170, %cst_55 {dimension_numbers = #tpu.dot_dimension_numbers<[2], [1], [1], [2], [0, 0, 0, 1, 1, 2], [0], [0]>} : vector<2x8x32xf32>, vector<2x32x32xf32>, vector<2x8x32xf32> -> vector<2x8x32xf32>
    "tpu.trace_stop"() : () -> ()
    %183 = vector.shape_cast %182 : vector<2x8x32xf32> to vector<16x32xf32>
    %cst_56 = arith.constant dense<0.000000e+00> : vector<16x32xf32>
    %184 = tpu.matmul %183, %136, %cst_56 {dimension_numbers = #tpu.dot_dimension_numbers<[1], [0], [0], [1], [0, 0, 1, 1], [], []>} : vector<16x32xf32>, vector<32x32xf32>, vector<16x32xf32> -> vector<16x32xf32>
    %185 = vector.shape_cast %144 : vector<32xf32> to vector<1x32xf32>
    %186 = vector.broadcast %185 : vector<1x32xf32> to vector<16x32xf32>
    %187 = arith.addf %184, %186 : vector<16x32xf32>
    %188 = arith.addf %130, %187 : vector<16x32xf32>
    %cst_57 = arith.constant dense<0.000000e+00> : vector<16xf32>
    %189 = vector.multi_reduction <add>, %188, %cst_57 [1] : vector<16x32xf32> to vector<16xf32>
    %190 = vector.shape_cast %189 : vector<16xf32> to vector<16x1xf32>
    %cst_58 = arith.constant 3.200000e+01 : f32
    %191 = vector.broadcast %cst_58 : f32 to vector<16x1xf32>
    %192 = arith.divf %190, %191 : vector<16x1xf32>
    %193 = vector.broadcast %192 : vector<16x1xf32> to vector<16x32xf32>
    %194 = arith.subf %188, %193 : vector<16x32xf32>
    %195 = arith.mulf %194, %194 : vector<16x32xf32>
    %cst_59 = arith.constant dense<0.000000e+00> : vector<16xf32>
    %196 = vector.multi_reduction <add>, %195, %cst_59 [1] : vector<16x32xf32> to vector<16xf32>
    %197 = vector.shape_cast %196 : vector<16xf32> to vector<16x1xf32>
    %cst_60 = arith.constant 3.200000e+01 : f32
    %198 = vector.broadcast %cst_60 : f32 to vector<16x1xf32>
    %199 = arith.divf %197, %198 : vector<16x1xf32>
    %200 = vector.broadcast %192 : vector<16x1xf32> to vector<16x32xf32>
    %201 = arith.subf %188, %200 : vector<16x32xf32>
    %cst_61 = arith.constant 9.99999974E-6 : f32
    %202 = vector.broadcast %cst_61 : f32 to vector<16x1xf32>
    %203 = arith.addf %199, %202 : vector<16x1xf32>
    %204 = math.rsqrt %203 : vector<16x1xf32>
    %205 = vector.broadcast %204 : vector<16x1xf32> to vector<16x32xf32>
    %206 = arith.mulf %201, %205 : vector<16x32xf32>
    %207 = vector.shape_cast %146 : vector<32xf32> to vector<1x32xf32>
    %208 = vector.broadcast %207 : vector<1x32xf32> to vector<16x32xf32>
    %209 = arith.mulf %206, %208 : vector<16x32xf32>
    %210 = vector.shape_cast %148 : vector<32xf32> to vector<1x32xf32>
    %211 = vector.broadcast %210 : vector<1x32xf32> to vector<16x32xf32>
    %212 = arith.addf %209, %211 : vector<16x32xf32>
    %cst_62 = arith.constant dense<0.000000e+00> : vector<16x128xf32>
    %213 = tpu.matmul %212, %134, %cst_62 {dimension_numbers = #tpu.dot_dimension_numbers<[1], [0], [0], [1], [0, 0, 1, 1], [], []>} : vector<16x32xf32>, vector<32x128xf32>, vector<16x128xf32> -> vector<16x128xf32>
    %214 = vector.shape_cast %142 : vector<128xf32> to vector<1x128xf32>
    %215 = vector.broadcast %214 : vector<1x128xf32> to vector<16x128xf32>
    %216 = arith.addf %213, %215 : vector<16x128xf32>
    %cst_63 = arith.constant 0.000000e+00 : f32
    %217 = vector.broadcast %cst_63 : f32 to vector<16x128xf32>
    %218 = arith.maximumf %216, %217 : vector<16x128xf32>
    %c1_64 = arith.constant 1 : index
    %c0_65 = arith.constant 0 : index
    %c0_66 = arith.constant 0 : index
    %219 = vector.load %arg5[%c1_64, %c0_65, %c0_66] : memref<2x128x32xf32, #tpu.memory_space<vmem>>, vector<1x128x32xf32>
    %220 = vector.shape_cast %219 : vector<1x128x32xf32> to vector<128x32xf32>
    %cst_67 = arith.constant dense<0.000000e+00> : vector<16x32xf32>
    %221 = tpu.matmul %218, %220, %cst_67 {dimension_numbers = #tpu.dot_dimension_numbers<[1], [0], [0], [1], [0, 0, 1, 1], [], []>} : vector<16x128xf32>, vector<128x32xf32>, vector<16x32xf32> -> vector<16x32xf32>
    %222 = vector.shape_cast %150 : vector<32xf32> to vector<1x32xf32>
    %223 = vector.broadcast %222 : vector<1x32xf32> to vector<16x32xf32>
    %224 = arith.addf %221, %223 : vector<16x32xf32>
    %225 = arith.addf %212, %224 : vector<16x32xf32>
    %cst_68 = arith.constant dense<0.000000e+00> : vector<16xf32>
    %226 = vector.multi_reduction <add>, %225, %cst_68 [1] : vector<16x32xf32> to vector<16xf32>
    %227 = vector.shape_cast %226 : vector<16xf32> to vector<16x1xf32>
    %cst_69 = arith.constant 3.200000e+01 : f32
    %228 = vector.broadcast %cst_69 : f32 to vector<16x1xf32>
    %229 = arith.divf %227, %228 : vector<16x1xf32>
    %230 = vector.broadcast %229 : vector<16x1xf32> to vector<16x32xf32>
    %231 = arith.subf %225, %230 : vector<16x32xf32>
    %232 = arith.mulf %231, %231 : vector<16x32xf32>
    %cst_70 = arith.constant dense<0.000000e+00> : vector<16xf32>
    %233 = vector.multi_reduction <add>, %232, %cst_70 [1] : vector<16x32xf32> to vector<16xf32>
    %234 = vector.shape_cast %233 : vector<16xf32> to vector<16x1xf32>
    %cst_71 = arith.constant 3.200000e+01 : f32
    %235 = vector.broadcast %cst_71 : f32 to vector<16x1xf32>
    %236 = arith.divf %234, %235 : vector<16x1xf32>
    %237 = vector.broadcast %229 : vector<16x1xf32> to vector<16x32xf32>
    %238 = arith.subf %225, %237 : vector<16x32xf32>
    %cst_72 = arith.constant 9.99999974E-6 : f32
    %239 = vector.broadcast %cst_72 : f32 to vector<16x1xf32>
    %240 = arith.addf %236, %239 : vector<16x1xf32>
    %241 = math.rsqrt %240 : vector<16x1xf32>
    %242 = vector.broadcast %241 : vector<16x1xf32> to vector<16x32xf32>
    %243 = arith.mulf %238, %242 : vector<16x32xf32>
    %244 = vector.shape_cast %152 : vector<32xf32> to vector<1x32xf32>
    %245 = vector.broadcast %244 : vector<1x32xf32> to vector<16x32xf32>
    %246 = arith.mulf %243, %245 : vector<16x32xf32>
    %247 = vector.shape_cast %154 : vector<32xf32> to vector<1x32xf32>
    %248 = vector.broadcast %247 : vector<1x32xf32> to vector<16x32xf32>
    %249 = arith.addf %246, %248 : vector<16x32xf32>
    %250 = vector.shape_cast %249 : vector<16x32xf32> to vector<2x8x32xf32>
    %251 = vector.extract_strided_slice %250 {offsets = [0, 0, 0], sizes = [2, 1, 32], strides = [1, 1, 1]} : vector<2x8x32xf32> to vector<2x1x32xf32>
    %252 = vector.shape_cast %251 : vector<2x1x32xf32> to vector<2x32xf32>
    %253 = vector.extract_strided_slice %250 {offsets = [0, 1, 0], sizes = [2, 1, 32], strides = [1, 1, 1]} : vector<2x8x32xf32> to vector<2x1x32xf32>
    %254 = vector.shape_cast %253 : vector<2x1x32xf32> to vector<2x32xf32>
    %255 = vector.extract_strided_slice %250 {offsets = [0, 2, 0], sizes = [2, 1, 32], strides = [1, 1, 1]} : vector<2x8x32xf32> to vector<2x1x32xf32>
    %256 = vector.shape_cast %255 : vector<2x1x32xf32> to vector<2x32xf32>
    %257 = vector.extract_strided_slice %250 {offsets = [0, 3, 0], sizes = [2, 1, 32], strides = [1, 1, 1]} : vector<2x8x32xf32> to vector<2x1x32xf32>
    %258 = vector.shape_cast %257 : vector<2x1x32xf32> to vector<2x32xf32>
    %259 = vector.extract_strided_slice %250 {offsets = [0, 4, 0], sizes = [2, 1, 32], strides = [1, 1, 1]} : vector<2x8x32xf32> to vector<2x1x32xf32>
    %260 = vector.shape_cast %259 : vector<2x1x32xf32> to vector<2x32xf32>
    %261 = vector.extract_strided_slice %250 {offsets = [0, 5, 0], sizes = [2, 1, 32], strides = [1, 1, 1]} : vector<2x8x32xf32> to vector<2x1x32xf32>
    %262 = vector.shape_cast %261 : vector<2x1x32xf32> to vector<2x32xf32>
    %263 = vector.extract_strided_slice %250 {offsets = [0, 6, 0], sizes = [2, 1, 32], strides = [1, 1, 1]} : vector<2x8x32xf32> to vector<2x1x32xf32>
    %264 = vector.shape_cast %263 : vector<2x1x32xf32> to vector<2x32xf32>
    %265 = vector.extract_strided_slice %250 {offsets = [0, 7, 0], sizes = [2, 1, 32], strides = [1, 1, 1]} : vector<2x8x32xf32> to vector<2x1x32xf32>
    %266 = vector.shape_cast %265 : vector<2x1x32xf32> to vector<2x32xf32>
    %267 = tpu.concatenate %252, %254, %256, %258, %260, %262, %264, %266 in 1 : vector<2x32xf32>, vector<2x32xf32>, vector<2x32xf32>, vector<2x32xf32>, vector<2x32xf32>, vector<2x32xf32>, vector<2x32xf32>, vector<2x32xf32> -> vector<2x256xf32>
    %c0_73 = arith.constant 0 : index
    %c0_74 = arith.constant 0 : index
    %268 = vector.load %arg6[%c0_73, %c0_74] : memref<2x256xf32, #tpu.memory_space<vmem>>, vector<2x256xf32>
    tpu.vector_store %arg6[%c0_73, %c0_74], %267 {strides = array<i32>} : memref<2x256xf32, #tpu.memory_space<vmem>>, vector<2x256xf32>,
    return
  }
  func.func @transform_0(%arg0: i32) -> (i32, i32, i32) {
    %c0_i32 = arith.constant 0 : i32
    %c0_i32_0 = arith.constant 0 : i32
    %c0_i32_1 = arith.constant 0 : i32
    return %arg0, %c0_i32, %c0_i32_0 : i32, i32, i32
  }
  func.func @transform_1(%arg0: i32) -> (i32, i32) {
    %c0_i32 = arith.constant 0 : i32
    %c0_i32_0 = arith.constant 0 : i32
    %c0_i32_1 = arith.constant 0 : i32
    return %c0_i32, %c0_i32_0 : i32, i32
  }
  func.func @transform_2(%arg0: i32) -> (i32, i32) {
    %c0_i32 = arith.constant 0 : i32
    %c0_i32_0 = arith.constant 0 : i32
    %c0_i32_1 = arith.constant 0 : i32
    return %c0_i32, %c0_i32_0 : i32, i32
  }
  func.func @transform_3(%arg0: i32) -> (i32, i32, i32) {
    %c0_i32 = arith.constant 0 : i32
    %c0_i32_0 = arith.constant 0 : i32
    %c0_i32_1 = arith.constant 0 : i32
    %c0_i32_2 = arith.constant 0 : i32
    return %c0_i32, %c0_i32_0, %c0_i32_1 : i32, i32, i32
  }
  func.func @transform_4(%arg0: i32) -> (i32, i32, i32) {
    %c0_i32 = arith.constant 0 : i32
    %c0_i32_0 = arith.constant 0 : i32
    %c0_i32_1 = arith.constant 0 : i32
    %c0_i32_2 = arith.constant 0 : i32
    return %c0_i32, %c0_i32_0, %c0_i32_1 : i32, i32, i32
  }
  func.func @transform_5(%arg0: i32) -> (i32, i32) {
    %c0_i32 = arith.constant 0 : i32
    %c0_i32_0 = arith.constant 0 : i32
    return %arg0, %c0_i32 : i32, i32
  }
}

</mosaic_0001>

<llo_original>
// kernel: tpu_custom_call.1
$region0: #{tpu_custom_call.1}
  #allocation0 [shape = 'u32[]', space=smem, size = 0x4, offset = 0x4, fixed_abs, tag = 'smem constant byte address 0x4 - core index']
  #allocation1 [shape = 'u32[144,128]{1,0:T(1,128)}', space=vmem, size = 0x12000, scoped, tag = 'internal scratch']
  %s0 = inlined_call_operand.vmem [shape: f32[2,8,16], index: 0, kind: input, shape index: {}]
  %s1 = inlined_call_operand.vmem [shape: f32[24,32], index: 1, kind: input, shape index: {}]
  %s2 = inlined_call_operand.vmem [shape: f32[64,32], index: 2, kind: input, shape index: {}]
  %s3 = inlined_call_operand.vmem [shape: f32[2,40,288], index: 3, kind: input, shape index: {}]
  %s4 = inlined_call_operand.vmem [shape: f32[2,128,32], index: 4, kind: input, shape index: {}]
  %s5 = inlined_call_operand.hbm [shape: f32[2,256], index: 5, kind: output, shape index: {}]
  %s6 = sld [smem:[#allocation0]]
  $region30: #{tpu_custom_call.1} parent=0
    _
  %s8 = ssub.s32 1, %s6
  %s9 = scalar_select 0, %s8, %s6
  $region1: #{tpu_custom_call.1} parent=0
    #allocation2 [shape = 'u8[2048]{0}', space=vmem, size = 0x800, scoped, tag = 'output window, operand 0, single buffered']
    #allocation3 [shape = 's32[1]{0}', space=sflag, size = 0x4, scoped, tag = 'scoped memory for tpu_custom_call.1']
    %10 = vsyncpa [#allocation3], 0
    // Predicated region
    $region2: #{tpu_custom_call.1} parent=1 // pred_check
      _
    $region3: #{tpu_custom_call.1} parent=1 // pred_check_branch
      %12 = sbr.rel (0) target = $region5
    $region4: #{tpu_custom_call.1} parent=1 // pred_region
      _
    $region5: #{tpu_custom_call.1} parent=1 // pred_fallthru
      _
    // Predicated region
    $region6: #{tpu_custom_call.1} parent=1 // pred_check
      _
    $region7: #{tpu_custom_call.1} parent=1 // pred_check_branch
      %14 = sbr.rel (0) target = $region9
    $region8: #{tpu_custom_call.1} parent=1 // pred_region
      _
    $region9: #{tpu_custom_call.1} parent=1 // pred_fallthru
      _
    // Predicated region
    $region10: #{tpu_custom_call.1} parent=1 // pred_check
      _
    $region11: #{tpu_custom_call.1} parent=1 // pred_check_branch
      %16 = sbr.rel (0) target = $region13
    $region12: #{tpu_custom_call.1} parent=1 // pred_region
      _
    $region13: #{tpu_custom_call.1} parent=1 // pred_fallthru
      _
    // Predicated region
    $region14: #{tpu_custom_call.1} parent=1 // pred_check
      _
    $region15: #{tpu_custom_call.1} parent=1 // pred_check_branch
      %18 = sbr.rel (0) target = $region17
    $region16: #{tpu_custom_call.1} parent=1 // pred_region
      _
    $region17: #{tpu_custom_call.1} parent=1 // pred_fallthru
      _
    // Predicated region
    $region18: #{tpu_custom_call.1} parent=1 // pred_check
      _
    $region19: #{tpu_custom_call.1} parent=1 // pred_check_branch
      %20 = sbr.rel (0) target = $region21
    $region20: #{tpu_custom_call.1} parent=1 // pred_region
      _
    $region21: #{tpu_custom_call.1} parent=1 // pred_fallthru
      _
    %v21 = vld [vmem:[%s0] sm:$0xff]
    %v22 = vld [vmem:[%s0 + $0x8] sm:$0xff]
    %v23 = vld [vmem:[%s1] sm:$0xff]
    %v24 = vld [vmem:[%s1 + $0x8] sm:$0xff]
    %v25 = vld [vmem:[%s1 + $0x10] sm:$0xff]
    %vm26 = vcmask 130048
    %v28 = vsel %vm26, %v21, 0
    %v31 = vsel %vm26, %v22, 0
    %33 = vmatprep.subr.mxu0 0.0
    %34 = vmatpush1.msra.mxu0 %v23
    %35 = vmatprep.subr.mxu0 0.0
    %36 = vmatpush1.msra.mxu0 %v24
    %37 = vmatprep.subr.mxu0 0.0
    %38 = vmatpush1.msra.mxu0 0.0
    %39 = vmatprep.subr.mxu0 0.0
    %40 = vmatpush1.msra.mxu0 0.0
    %41 = vmatprep.subr.mxu0 0.0
    %42 = vmatpush1.msra.mxu0 0.0
    %43 = vmatprep.subr.mxu0 0.0
    %44 = vmatpush1.msra.mxu0 0.0
    %45 = vmatprep.subr.mxu0 0.0
    %46 = vmatpush1.msra.mxu0 0.0
    %47 = vmatprep.subr.mxu0 0.0
    %48 = vmatpush1.msra.mxu0 0.0
    %49 = vmatprep.subr.mxu0 0.0
    %50 = vmatpush1.msra.mxu0 0.0
    %51 = vmatprep.subr.mxu0 0.0
    %52 = vmatpush1.msra.mxu0 0.0
    %53 = vmatprep.subr.mxu0 0.0
    %54 = vmatpush1.msra.mxu0 0.0
    %55 = vmatprep.subr.mxu0 0.0
    %56 = vmatpush1.msra.mxu0 0.0
    %57 = vmatprep.subr.mxu0 0.0
    %58 = vmatpush1.msra.mxu0 0.0
    %59 = vmatprep.subr.mxu0 0.0
    %60 = vmatpush1.msra.mxu0 0.0
    %61 = vmatprep.subr.mxu0 0.0
    %62 = vmatpush1.msra.mxu0 0.0
    %63 = vmatprep.subr.mxu0 0.0
    %64 = vmatpush1.msra.mxu0 0.0
    %65 = vmatprep.subr.mxu0 0.0
    %66 = vmatpush1.msra.mxu0 0.0
    %67 = vmatprep.subr.mxu0 0.0
    %68 = vmatpush1.msra.mxu0 0.0
    %69 = vmatprep.subr.mxu0 0.0
    %70 = vmatpush1.msra.mxu0 0.0
    %71 = vmatprep.subr.mxu0 0.0
    %72 = vmatpush1.msra.mxu0 0.0
    %73 = vmatprep.subr.mxu0 0.0
    %74 = vmatpush1.msra.mxu0 0.0
    %75 = vmatprep.subr.mxu0 0.0
    %76 = vmatpush1.msra.mxu0 0.0
    %77 = vmatprep.subr.mxu0 0.0
    %78 = vmatpush1.msra.mxu0 0.0
    %79 = vmatprep.subr.mxu0 0.0
    %80 = vmatpush1.msra.mxu0 0.0
    %81 = vmatprep.subr.mxu0 0.0
    %82 = vmatpush1.msra.mxu0 0.0
    %83 = vmatprep.subr.mxu0 0.0
    %84 = vmatpush1.msra.mxu0 0.0
    %85 = vmatprep.subr.mxu0 0.0
    %86 = vmatpush1.msra.mxu0 0.0
    %87 = vmatprep.subr.mxu0 0.0
    %88 = vmatpush1.msra.mxu0 0.0
    %89 = vmatprep.subr.mxu0 0.0
    %90 = vmatpush1.msra.mxu0 0.0
    %91 = vmatprep.subr.mxu0 0.0
    %92 = vmatpush1.msra.mxu0 0.0
    %93 = vmatprep.subr.mxu0 0.0
    %94 = vmatpush1.msra.mxu0 0.0
    %95 = vmatprep.subr.mxu0 0.0
    %96 = vmatpush1.msra.mxu0 0.0
    %97 = vmatprep.mubr.f32.mxu0 0.0
    %98 = vmatmul.mubr.f32.gmra.mrb[0].mxu0 %v28
    %v99 = vpop.f32.mrb[0].mxu0
    %v100 = vadd.f32 0.0, %v99
    %v101 = vpop.f32.mrb[0].mxu0
    %102 = vmatprep.mubr.f32.mxu0 0.0
    %103 = vmatmul.mubr.f32.gmra.mrb[0].mxu0 %v31
    %v104 = vpop.f32.mrb[0].mxu0
    %v105 = vadd.f32 0.0, %v104
    %v106 = vpop.f32.mrb[0].mxu0
    %107 = vdwg.mxu0
    %v108 = vadd.f32 %v100, %v25
    %v109 = vadd.f32 %v105, %v25
    %v110 = vld [vmem:[%s2] sm:$0xff]
    %v111 = vld [vmem:[%s2 + $0x8] sm:$0xff]
    %v112 = vld [vmem:[%s2 + $0x10] sm:$0xff]
    %v113 = vld [vmem:[%s2 + $0x18] sm:$0xff]
    %v114 = vld [vmem:[%s2 + $0x20] sm:$0xff]
    %v115 = vld [vmem:[%s2 + $0x28] sm:$0xff]
    %v116 = vld [vmem:[%s2 + $0x30] sm:$0xff]
    %v117 = vld [vmem:[%s2 + $0x38] sm:$0xff]
    %v118 = vld [vmem:[%s3] sm:$0xff]
    %v119 = vld [vmem:[%s3 + $0x18] sm:$0xff]
    %v120 = vld [vmem:[%s3 + $0x30] sm:$0xff]
    %v121 = vld [vmem:[%s3 + $0x48] sm:$0xff]
    %v122 = vld [vmem:[%s3 + $0x8] sm:$0xff]
    %v123 = vld [vmem:[%s3 + $0x20] sm:$0xff]
    %v124 = vld [vmem:[%s3 + $0x38] sm:$0xff]
    %v125 = vld [vmem:[%s3 + $0x50] sm:$0xff]
    %v126 = vld [vmem:[%s3 + $0x10] sm:$0xff]
    %v127 = vld [vmem:[%s3 + $0x28] sm:$0xff]
    %v128 = vld [vmem:[%s3 + $0x40] sm:$0xff]
    %v129 = vld [vmem:[%s3 + $0x58] sm:$0xff]
    %v130 = vld [vmem:[%s3 + $0x60] sm:$0xff]
    %v131 = vlaneseq
    %v132 = vshrl.u32 %v131, 7
    %v133 = vsub.s32 0, %v132
    %v134 = vrot.slane %v130, %v133
    %vm135 = vcmask 261120
    %v137 = vsel %vm135, %v108, 0
    %v140 = vsel %vm135, %v109, 0
    %142 = vmatprep.subr.mxu0 0.0
    %143 = vmatpush1.msra.mxu0 %v118
    %144 = vmatprep.subr.mxu0 0.0
    %145 = vmatpush1.msra.mxu0 %v119
    %146 = vmatprep.subr.mxu0 0.0
    %147 = vmatpush1.msra.mxu0 %v120
    %148 = vmatprep.subr.mxu0 0.0
    %149 = vmatpush1.msra.mxu0 %v121
    %150 = vmatprep.subr.mxu0 0.0
    %151 = vmatpush1.msra.mxu0 0.0
    %152 = vmatprep.subr.mxu0 0.0
    %153 = vmatpush1.msra.mxu0 0.0
    %154 = vmatprep.subr.mxu0 0.0
    %155 = vmatpush1.msra.mxu0 0.0
    %156 = vmatprep.subr.mxu0 0.0
    %157 = vmatpush1.msra.mxu0 0.0
    %158 = vmatprep.subr.mxu0 0.0
    %159 = vmatpush1.msra.mxu0 0.0
    %160 = vmatprep.subr.mxu0 0.0
    %161 = vmatpush1.msra.mxu0 0.0
    %162 = vmatprep.subr.mxu0 0.0
    %163 = vmatpush1.msra.mxu0 0.0
    %164 = vmatprep.subr.mxu0 0.0
    %165 = vmatpush1.msra.mxu0 0.0
    %166 = vmatprep.subr.mxu0 0.0
    %167 = vmatpush1.msra.mxu0 0.0
    %168 = vmatprep.subr.mxu0 0.0
    %169 = vmatpush1.msra.mxu0 0.0
    %170 = vmatprep.subr.mxu0 0.0
    %171 = vmatpush1.msra.mxu0 0.0
    %172 = vmatprep.subr.mxu0 0.0
    %173 = vmatpush1.msra.mxu0 0.0
    %174 = vmatprep.subr.mxu0 0.0
    %175 = vmatpush1.msra.mxu0 0.0
    %176 = vmatprep.subr.mxu0 0.0
    %177 = vmatpush1.msra.mxu0 0.0
    %178 = vmatprep.subr.mxu0 0.0
    %179 = vmatpush1.msra.mxu0 0.0
    %180 = vmatprep.subr.mxu0 0.0
    %181 = vmatpush1.msra.mxu0 0.0
    %182 = vmatprep.subr.mxu0 0.0
    %183 = vmatpush1.msra.mxu0 0.0
    %184 = vmatprep.subr.mxu0 0.0
    %185 = vmatpush1.msra.mxu0 0.0
    %186 = vmatprep.subr.mxu0 0.0
    %187 = vmatpush1.msra.mxu0 0.0
    %188 = vmatprep.subr.mxu0 0.0
    %189 = vmatpush1.msra.mxu0 0.0
    %190 = vmatprep.subr.mxu0 0.0
    %191 = vmatpush1.msra.mxu0 0.0
    %192 = vmatprep.subr.mxu0 0.0
    %193 = vmatpush1.msra.mxu0 0.0
    %194 = vmatprep.subr.mxu0 0.0
    %195 = vmatpush1.msra.mxu0 0.0
    %196 = vmatprep.subr.mxu0 0.0
    %197 = vmatpush1.msra.mxu0 0.0
    %198 = vmatprep.subr.mxu0 0.0
    %199 = vmatpush1.msra.mxu0 0.0
    %200 = vmatprep.subr.mxu0 0.0
    %201 = vmatpush1.msra.mxu0 0.0
    %202 = vmatprep.subr.mxu0 0.0
    %203 = vmatpush1.msra.mxu0 0.0
    %204 = vmatprep.subr.mxu0 0.0
    %205 = vmatpush1.msra.mxu0 0.0
    %206 = vmatprep.mubr.f32.mxu0 0.0
    %207 = vmatmul.mubr.f32.gmra.mrb[0].mxu0 %v137
    %v208 = vpop.f32.mrb[0].mxu0
    %v209 = vadd.f32 %v134, %v208
    %v210 = vpop.f32.mrb[0].mxu0
    %211 = vmatprep.mubr.f32.mxu0 0.0
    %212 = vmatmul.mubr.f32.gmra.mrb[0].mxu0 %v140
    %v213 = vpop.f32.mrb[0].mxu0
    %v214 = vadd.f32 %v134, %v213
    %v215 = vpop.f32.mrb[0].mxu0
    %216 = vdwg.mxu0
    %221 = vrot.lane.b32.xlu0 %v110, 32
    %v222 = vpop.permute.xlu0 %221
    %223 = vrot.lane.b32.xlu0 %v111, 32
    %v224 = vpop.permute.xlu0 %223
    %225 = vrot.lane.b32.xlu0 %v112, 32
    %v226 = vpop.permute.xlu0 %225
    %227 = vrot.lane.b32.xlu0 %v113, 32
    %v228 = vpop.permute.xlu0 %227
    %v233 = vmul.f32 %v209, %v222
    %v234 = vmul.f32 %v209, %v224
    %v235 = vmul.f32 %v209, %v226
    %v236 = vmul.f32 %v209, %v228
    %v237 = vmul.f32 %v214, %v222
    %v238 = vmul.f32 %v214, %v224
    %v239 = vmul.f32 %v214, %v226
    %v240 = vmul.f32 %v214, %v228
    %241 = vrot.lane.b32.xlu0 %v110, 64
    %v242 = vpop.permute.xlu0 %241
    %243 = vrot.lane.b32.xlu0 %v111, 64
    %v244 = vpop.permute.xlu0 %243
    %245 = vrot.lane.b32.xlu0 %v112, 64
    %v246 = vpop.permute.xlu0 %245
    %247 = vrot.lane.b32.xlu0 %v113, 64
    %v248 = vpop.permute.xlu0 %247
    %v253 = vmul.f32 %v209, %v242
    %v254 = vmul.f32 %v209, %v244
    %v255 = vmul.f32 %v209, %v246
    %v256 = vmul.f32 %v209, %v248
    %v257 = vmul.f32 %v214, %v242
    %v258 = vmul.f32 %v214, %v244
    %v259 = vmul.f32 %v214, %v246
    %v260 = vmul.f32 %v214, %v248
    %265 = vrot.lane.b32.xlu0 %v233, 96
    %v266 = vpop.permute.xlu0 %265
    %267 = vrot.lane.b32.xlu0 %v234, 96
    %v268 = vpop.permute.xlu0 %267
    %269 = vrot.lane.b32.xlu0 %v235, 96
    %v270 = vpop.permute.xlu0 %269
    %271 = vrot.lane.b32.xlu0 %v236, 96
    %v272 = vpop.permute.xlu0 %271
    %v274 = vsel %vm135, %v209, 0
    %v276 = vsel %vm135, %v266, 0
    %v278 = vsel %vm135, %v268, 0
    %v280 = vsel %vm135, %v270, 0
    %v282 = vsel %vm135, %v272, 0
    %284 = vmatprep.subr.mxu0 0.0
    %285 = vmatpush1.xpose.msra.mxu0 %v276
    %286 = vmatprep.subr.mxu0 0.0
    %287 = vmatpush1.xpose.msra.mxu0 %v278
    %288 = vmatprep.subr.mxu0 0.0
    %289 = vmatpush1.xpose.msra.mxu0 %v280
    %290 = vmatprep.subr.mxu0 0.0
    %291 = vmatpush1.xpose.msra.mxu0 %v282
    %292 = vmatprep.subr.mxu0 0.0
    %293 = vmatpush1.xpose.msra.mxu0 0.0
    %294 = vmatprep.subr.mxu0 0.0
    %295 = vmatpush1.xpose.msra.mxu0 0.0
    %296 = vmatprep.subr.mxu0 0.0
    %297 = vmatpush1.xpose.msra.mxu0 0.0
    %298 = vmatprep.subr.mxu0 0.0
    %299 = vmatpush1.xpose.msra.mxu0 0.0
    %300 = vmatprep.subr.mxu0 0.0
    %301 = vmatpush1.xpose.msra.mxu0 0.0
    %302 = vmatprep.subr.mxu0 0.0
    %303 = vmatpush1.xpose.msra.mxu0 0.0
    %304 = vmatprep.subr.mxu0 0.0
    %305 = vmatpush1.xpose.msra.mxu0 0.0
    %306 = vmatprep.subr.mxu0 0.0
    %307 = vmatpush1.xpose.msra.mxu0 0.0
    %308 = vmatprep.subr.mxu0 0.0
    %309 = vmatpush1.xpose.msra.mxu0 0.0
    %310 = vmatprep.subr.mxu0 0.0
    %311 = vmatpush1.xpose.msra.mxu0 0.0
    %312 = vmatprep.subr.mxu0 0.0
    %313 = vmatpush1.xpose.msra.mxu0 0.0
    %314 = vmatprep.subr.mxu0 0.0
    %315 = vmatpush1.xpose.msra.mxu0 0.0
    %316 = vmatprep.subr.mxu0 0.0
    %317 = vmatpush1.xpose.msra.mxu0 0.0
    %318 = vmatprep.subr.mxu0 0.0
    %319 = vmatpush1.xpose.msra.mxu0 0.0
    %320 = vmatprep.subr.mxu0 0.0
    %321 = vmatpush1.xpose.msra.mxu0 0.0
    %322 = vmatprep.subr.mxu0 0.0
    %323 = vmatpush1.xpose.msra.mxu0 0.0
    %324 = vmatprep.subr.mxu0 0.0
    %325 = vmatpush1.xpose.msra.mxu0 0.0
    %326 = vmatprep.subr.mxu0 0.0
    %327 = vmatpush1.xpose.msra.mxu0 0.0
    %328 = vmatprep.subr.mxu0 0.0
    %329 = vmatpush1.xpose.msra.mxu0 0.0
    %330 = vmatprep.subr.mxu0 0.0
    %331 = vmatpush1.xpose.msra.mxu0 0.0
    %332 = vmatprep.subr.mxu0 0.0
    %333 = vmatpush1.xpose.msra.mxu0 0.0
    %334 = vmatprep.subr.mxu0 0.0
    %335 = vmatpush1.xpose.msra.mxu0 0.0
    %336 = vmatprep.subr.mxu0 0.0
    %337 = vmatpush1.xpose.msra.mxu0 0.0
    %338 = vmatprep.subr.mxu0 0.0
    %339 = vmatpush1.xpose.msra.mxu0 0.0
    %340 = vmatprep.subr.mxu0 0.0
    %341 = vmatpush1.xpose.msra.mxu0 0.0
    %342 = vmatprep.subr.mxu0 0.0
    %343 = vmatpush1.xpose.msra.mxu0 0.0
    %344 = vmatprep.subr.mxu0 0.0
    %345 = vmatpush1.xpose.msra.mxu0 0.0
    %346 = vmatprep.subr.mxu0 0.0
    %347 = vmatpush1.xpose.msra.mxu0 0.0
    %348 = vmatprep.mubr.f32.mxu0 0.0
    %349 = vmatmul.mubr.f32.gmra.mrb[0].mxu0 %v274
    %v350 = vpop.f32.mrb[0].mxu0
    %v351 = vadd.f32 0.0, %v350
    %v352 = vpop.f32.mrb[0].mxu0
    %353 = vdwg.mxu0
    %358 = vrot.lane.b32.xlu0 %v237, 96
    %v359 = vpop.permute.xlu0 %358
    %360 = vrot.lane.b32.xlu0 %v238, 96
    %v361 = vpop.permute.xlu0 %360
    %362 = vrot.lane.b32.xlu0 %v239, 96
    %v363 = vpop.permute.xlu0 %362
    %364 = vrot.lane.b32.xlu0 %v240, 96
    %v365 = vpop.permute.xlu0 %364
    %v367 = vsel %vm135, %v214, 0
    %v369 = vsel %vm135, %v359, 0
    %v371 = vsel %vm135, %v361, 0
    %v373 = vsel %vm135, %v363, 0
    %v375 = vsel %vm135, %v365, 0
    %377 = vmatprep.subr.mxu0 0.0
    %378 = vmatpush1.xpose.msra.mxu0 %v369
    %379 = vmatprep.subr.mxu0 0.0
    %380 = vmatpush1.xpose.msra.mxu0 %v371
    %381 = vmatprep.subr.mxu0 0.0
    %382 = vmatpush1.xpose.msra.mxu0 %v373
    %383 = vmatprep.subr.mxu0 0.0
    %384 = vmatpush1.xpose.msra.mxu0 %v375
    %385 = vmatprep.subr.mxu0 0.0
    %386 = vmatpush1.xpose.msra.mxu0 0.0
    %387 = vmatprep.subr.mxu0 0.0
    %388 = vmatpush1.xpose.msra.mxu0 0.0
    %389 = vmatprep.subr.mxu0 0.0
    %390 = vmatpush1.xpose.msra.mxu0 0.0
    %391 = vmatprep.subr.mxu0 0.0
    %392 = vmatpush1.xpose.msra.mxu0 0.0
    %393 = vmatprep.subr.mxu0 0.0
    %394 = vmatpush1.xpose.msra.mxu0 0.0
    %395 = vmatprep.subr.mxu0 0.0
    %396 = vmatpush1.xpose.msra.mxu0 0.0
    %397 = vmatprep.subr.mxu0 0.0
    %398 = vmatpush1.xpose.msra.mxu0 0.0
    %399 = vmatprep.subr.mxu0 0.0
    %400 = vmatpush1.xpose.msra.mxu0 0.0
    %401 = vmatprep.subr.mxu0 0.0
    %402 = vmatpush1.xpose.msra.mxu0 0.0
    %403 = vmatprep.subr.mxu0 0.0
    %404 = vmatpush1.xpose.msra.mxu0 0.0
    %405 = vmatprep.subr.mxu0 0.0
    %406 = vmatpush1.xpose.msra.mxu0 0.0
    %407 = vmatprep.subr.mxu0 0.0
    %408 = vmatpush1.xpose.msra.mxu0 0.0
    %409 = vmatprep.subr.mxu0 0.0
    %410 = vmatpush1.xpose.msra.mxu0 0.0
    %411 = vmatprep.subr.mxu0 0.0
    %412 = vmatpush1.xpose.msra.mxu0 0.0
    %413 = vmatprep.subr.mxu0 0.0
    %414 = vmatpush1.xpose.msra.mxu0 0.0
    %415 = vmatprep.subr.mxu0 0.0
    %416 = vmatpush1.xpose.msra.mxu0 0.0
    %417 = vmatprep.subr.mxu0 0.0
    %418 = vmatpush1.xpose.msra.mxu0 0.0
    %419 = vmatprep.subr.mxu0 0.0
    %420 = vmatpush1.xpose.msra.mxu0 0.0
    %421 = vmatprep.subr.mxu0 0.0
    %422 = vmatpush1.xpose.msra.mxu0 0.0
    %423 = vmatprep.subr.mxu0 0.0
    %424 = vmatpush1.xpose.msra.mxu0 0.0
    %425 = vmatprep.subr.mxu0 0.0
    %426 = vmatpush1.xpose.msra.mxu0 0.0
    %427 = vmatprep.subr.mxu0 0.0
    %428 = vmatpush1.xpose.msra.mxu0 0.0
    %429 = vmatprep.subr.mxu0 0.0
    %430 = vmatpush1.xpose.msra.mxu0 0.0
    %431 = vmatprep.subr.mxu0 0.0
    %432 = vmatpush1.xpose.msra.mxu0 0.0
    %433 = vmatprep.subr.mxu0 0.0
    %434 = vmatpush1.xpose.msra.mxu0 0.0
    %435 = vmatprep.subr.mxu0 0.0
    %436 = vmatpush1.xpose.msra.mxu0 0.0
    %437 = vmatprep.subr.mxu0 0.0
    %438 = vmatpush1.xpose.msra.mxu0 0.0
    %439 = vmatprep.subr.mxu0 0.0
    %440 = vmatpush1.xpose.msra.mxu0 0.0
    %441 = vmatprep.mubr.f32.mxu0 0.0
    %442 = vmatmul.mubr.f32.gmra.mrb[0].mxu0 %v367
    %v443 = vpop.f32.mrb[0].mxu0
    %v444 = vadd.f32 0.0, %v443
    %v445 = vpop.f32.mrb[0].mxu0
    %446 = vdwg.mxu0
    %v447 = vsel %vm135, %v351, -inf
    %448 = vmax.xlane.f32.xlu0 %v447
    %v449 = vpop.xlane.xlu0 %448
    %v450 = vsel %vm135, %v444, -inf
    %451 = vmax.xlane.f32.xlu0 %v450
    %v452 = vpop.xlane.xlu0 %451
    %v453 = vsub.f32 %v351, %v449
    %v454 = vsub.f32 %v444, %v452
    %v455 = vmul.f32 %v453, 1.442695
    %v456 = vpow.pop %v455
    %v457 = vmul.f32 %v454, 1.442695
    %v458 = vpow.pop %v457
    %v460 = vsel %vm135, %v456, 0
    %v463 = vsel %vm135, %v458, 0
    %465 = vmatprep.subr.mxu0 0.0
    %466 = vmatpush1.msra.mxu0 %v114
    %467 = vmatprep.subr.mxu0 0.0
    %468 = vmatpush1.msra.mxu0 %v115
    %469 = vmatprep.subr.mxu0 0.0
    %470 = vmatpush1.msra.mxu0 %v116
    %471 = vmatprep.subr.mxu0 0.0
    %472 = vmatpush1.msra.mxu0 %v117
    %473 = vmatprep.subr.mxu0 0.0
    %474 = vmatpush1.msra.mxu0 0.0
    %475 = vmatprep.subr.mxu0 0.0
    %476 = vmatpush1.msra.mxu0 0.0
    %477 = vmatprep.subr.mxu0 0.0
    %478 = vmatpush1.msra.mxu0 0.0
    %479 = vmatprep.subr.mxu0 0.0
    %480 = vmatpush1.msra.mxu0 0.0
    %481 = vmatprep.subr.mxu0 0.0
    %482 = vmatpush1.msra.mxu0 0.0
    %483 = vmatprep.subr.mxu0 0.0
    %484 = vmatpush1.msra.mxu0 0.0
    %485 = vmatprep.subr.mxu0 0.0
    %486 = vmatpush1.msra.mxu0 0.0
    %487 = vmatprep.subr.mxu0 0.0
    %488 = vmatpush1.msra.mxu0 0.0
    %489 = vmatprep.subr.mxu0 0.0
    %490 = vmatpush1.msra.mxu0 0.0
    %491 = vmatprep.subr.mxu0 0.0
    %492 = vmatpush1.msra.mxu0 0.0
    %493 = vmatprep.subr.mxu0 0.0
    %494 = vmatpush1.msra.mxu0 0.0
    %495 = vmatprep.subr.mxu0 0.0
    %496 = vmatpush1.msra.mxu0 0.0
    %497 = vmatprep.subr.mxu0 0.0
    %498 = vmatpush1.msra.mxu0 0.0
    %499 = vmatprep.subr.mxu0 0.0
    %500 = vmatpush1.msra.mxu0 0.0
    %501 = vmatprep.subr.mxu0 0.0
    %502 = vmatpush1.msra.mxu0 0.0
    %503 = vmatprep.subr.mxu0 0.0
    %504 = vmatpush1.msra.mxu0 0.0
    %505 = vmatprep.subr.mxu0 0.0
    %506 = vmatpush1.msra.mxu0 0.0
    %507 = vmatprep.subr.mxu0 0.0
    %508 = vmatpush1.msra.mxu0 0.0
    %509 = vmatprep.subr.mxu0 0.0
    %510 = vmatpush1.msra.mxu0 0.0
    %511 = vmatprep.subr.mxu0 0.0
    %512 = vmatpush1.msra.mxu0 0.0
    %513 = vmatprep.subr.mxu0 0.0
    %514 = vmatpush1.msra.mxu0 0.0
    %515 = vmatprep.subr.mxu0 0.0
    %516 = vmatpush1.msra.mxu0 0.0
    %517 = vmatprep.subr.mxu0 0.0
    %518 = vmatpush1.msra.mxu0 0.0
    %519 = vmatprep.subr.mxu0 0.0
    %520 = vmatpush1.msra.mxu0 0.0
    %521 = vmatprep.subr.mxu0 0.0
    %522 = vmatpush1.msra.mxu0 0.0
    %523 = vmatprep.subr.mxu0 0.0
    %524 = vmatpush1.msra.mxu0 0.0
    %525 = vmatprep.subr.mxu0 0.0
    %526 = vmatpush1.msra.mxu0 0.0
    %527 = vmatprep.subr.mxu0 0.0
    %528 = vmatpush1.msra.mxu0 0.0
    %529 = vmatprep.mubr.f32.mxu0 0.0
    %530 = vmatmul.mubr.f32.gmra.mrb[0].mxu0 %v460
    %v531 = vpop.f32.mrb[0].mxu0
    %v532 = vadd.f32 0.0, %v531
    %v533 = vpop.f32.mrb[0].mxu0
    %534 = vmatprep.mubr.f32.mxu0 0.0
    %535 = vmatmul.mubr.f32.gmra.mrb[0].mxu0 %v463
    %v536 = vpop.f32.mrb[0].mxu0
    %v537 = vadd.f32 0.0, %v536
    %v538 = vpop.f32.mrb[0].mxu0
    %539 = vdwg.mxu0
    %v540 = vrcp.pop %v532
    %v541 = vrcp.pop %v537
    %v542 = vmul.f32 %v456, %v540
    %v543 = vmul.f32 %v458, %v541
    %548 = vrot.lane.b32.xlu0 %v253, 64
    %v549 = vpop.permute.xlu0 %548
    %550 = vrot.lane.b32.xlu0 %v254, 64
    %v551 = vpop.permute.xlu0 %550
    %552 = vrot.lane.b32.xlu0 %v255, 64
    %v553 = vpop.permute.xlu0 %552
    %554 = vrot.lane.b32.xlu0 %v256, 64
    %v555 = vpop.permute.xlu0 %554
    %v561 = vsel %vm135, %v542, 0
    %563 = vmatprep.subr.mxu0 0.0
    %564 = vmatpush1.msra.mxu0 %v549
    %565 = vmatprep.subr.mxu0 0.0
    %566 = vmatpush1.msra.mxu0 %v551
    %567 = vmatprep.subr.mxu0 0.0
    %568 = vmatpush1.msra.mxu0 %v553
    %569 = vmatprep.subr.mxu0 0.0
    %570 = vmatpush1.msra.mxu0 %v555
    %571 = vmatprep.subr.mxu0 0.0
    %572 = vmatpush1.msra.mxu0 0.0
    %573 = vmatprep.subr.mxu0 0.0
    %574 = vmatpush1.msra.mxu0 0.0
    %575 = vmatprep.subr.mxu0 0.0
    %576 = vmatpush1.msra.mxu0 0.0
    %577 = vmatprep.subr.mxu0 0.0
    %578 = vmatpush1.msra.mxu0 0.0
    %579 = vmatprep.subr.mxu0 0.0
    %580 = vmatpush1.msra.mxu0 0.0
    %581 = vmatprep.subr.mxu0 0.0
    %582 = vmatpush1.msra.mxu0 0.0
    %583 = vmatprep.subr.mxu0 0.0
    %584 = vmatpush1.msra.mxu0 0.0
    %585 = vmatprep.subr.mxu0 0.0
    %586 = vmatpush1.msra.mxu0 0.0
    %587 = vmatprep.subr.mxu0 0.0
    %588 = vmatpush1.msra.mxu0 0.0
    %589 = vmatprep.subr.mxu0 0.0
    %590 = vmatpush1.msra.mxu0 0.0
    %591 = vmatprep.subr.mxu0 0.0
    %592 = vmatpush1.msra.mxu0 0.0
    %593 = vmatprep.subr.mxu0 0.0
    %594 = vmatpush1.msra.mxu0 0.0
    %595 = vmatprep.subr.mxu0 0.0
    %596 = vmatpush1.msra.mxu0 0.0
    %597 = vmatprep.subr.mxu0 0.0
    %598 = vmatpush1.msra.mxu0 0.0
    %599 = vmatprep.subr.mxu0 0.0
    %600 = vmatpush1.msra.mxu0 0.0
    %601 = vmatprep.subr.mxu0 0.0
    %602 = vmatpush1.msra.mxu0 0.0
    %603 = vmatprep.subr.mxu0 0.0
    %604 = vmatpush1.msra.mxu0 0.0
    %605 = vmatprep.subr.mxu0 0.0
    %606 = vmatpush1.msra.mxu0 0.0
    %607 = vmatprep.subr.mxu0 0.0
    %608 = vmatpush1.msra.mxu0 0.0
    %609 = vmatprep.subr.mxu0 0.0
    %610 = vmatpush1.msra.mxu0 0.0
    %611 = vmatprep.subr.mxu0 0.0
    %612 = vmatpush1.msra.mxu0 0.0
    %613 = vmatprep.subr.mxu0 0.0
    %614 = vmatpush1.msra.mxu0 0.0
    %615 = vmatprep.subr.mxu0 0.0
    %616 = vmatpush1.msra.mxu0 0.0
    %617 = vmatprep.subr.mxu0 0.0
    %618 = vmatpush1.msra.mxu0 0.0
    %619 = vmatprep.subr.mxu0 0.0
    %620 = vmatpush1.msra.mxu0 0.0
    %621 = vmatprep.subr.mxu0 0.0
    %622 = vmatpush1.msra.mxu0 0.0
    %623 = vmatprep.subr.mxu0 0.0
    %624 = vmatpush1.msra.mxu0 0.0
    %625 = vmatprep.subr.mxu0 0.0
    %626 = vmatpush1.msra.mxu0 0.0
    %627 = vmatprep.mubr.f32.mxu0 0.0
    %628 = vmatmul.mubr.f32.gmra.mrb[0].mxu0 %v561
    %v629 = vpop.f32.mrb[0].mxu0
    %v630 = vadd.f32 0.0, %v629
    %v631 = vpop.f32.mrb[0].mxu0
    %632 = vdwg.mxu0
    %637 = vrot.lane.b32.xlu0 %v257, 64
    %v638 = vpop.permute.xlu0 %637
    %639 = vrot.lane.b32.xlu0 %v258, 64
    %v640 = vpop.permute.xlu0 %639
    %641 = vrot.lane.b32.xlu0 %v259, 64
    %v642 = vpop.permute.xlu0 %641
    %643 = vrot.lane.b32.xlu0 %v260, 64
    %v644 = vpop.permute.xlu0 %643
    %v650 = vsel %vm135, %v543, 0
    %652 = vmatprep.subr.mxu0 0.0
    %653 = vmatpush1.msra.mxu0 %v638
    %654 = vmatprep.subr.mxu0 0.0
    %655 = vmatpush1.msra.mxu0 %v640
    %656 = vmatprep.subr.mxu0 0.0
    %657 = vmatpush1.msra.mxu0 %v642
    %658 = vmatprep.subr.mxu0 0.0
    %659 = vmatpush1.msra.mxu0 %v644
    %660 = vmatprep.subr.mxu0 0.0
    %661 = vmatpush1.msra.mxu0 0.0
    %662 = vmatprep.subr.mxu0 0.0
    %663 = vmatpush1.msra.mxu0 0.0
    %664 = vmatprep.subr.mxu0 0.0
    %665 = vmatpush1.msra.mxu0 0.0
    %666 = vmatprep.subr.mxu0 0.0
    %667 = vmatpush1.msra.mxu0 0.0
    %668 = vmatprep.subr.mxu0 0.0
    %669 = vmatpush1.msra.mxu0 0.0
    %670 = vmatprep.subr.mxu0 0.0
    %671 = vmatpush1.msra.mxu0 0.0
    %672 = vmatprep.subr.mxu0 0.0
    %673 = vmatpush1.msra.mxu0 0.0
    %674 = vmatprep.subr.mxu0 0.0
    %675 = vmatpush1.msra.mxu0 0.0
    %676 = vmatprep.subr.mxu0 0.0
    %677 = vmatpush1.msra.mxu0 0.0
    %678 = vmatprep.subr.mxu0 0.0
    %679 = vmatpush1.msra.mxu0 0.0
    %680 = vmatprep.subr.mxu0 0.0
    %681 = vmatpush1.msra.mxu0 0.0
    %682 = vmatprep.subr.mxu0 0.0
    %683 = vmatpush1.msra.mxu0 0.0
    %684 = vmatprep.subr.mxu0 0.0
    %685 = vmatpush1.msra.mxu0 0.0
    %686 = vmatprep.subr.mxu0 0.0
    %687 = vmatpush1.msra.mxu0 0.0
    %688 = vmatprep.subr.mxu0 0.0
    %689 = vmatpush1.msra.mxu0 0.0
    %690 = vmatprep.subr.mxu0 0.0
    %691 = vmatpush1.msra.mxu0 0.0
    %692 = vmatprep.subr.mxu0 0.0
    %693 = vmatpush1.msra.mxu0 0.0
    %694 = vmatprep.subr.mxu0 0.0
    %695 = vmatpush1.msra.mxu0 0.0
    %696 = vmatprep.subr.mxu0 0.0
    %697 = vmatpush1.msra.mxu0 0.0
    %698 = vmatprep.subr.mxu0 0.0
    %699 = vmatpush1.msra.mxu0 0.0
    %700 = vmatprep.subr.mxu0 0.0
    %701 = vmatpush1.msra.mxu0 0.0
    %702 = vmatprep.subr.mxu0 0.0
    %703 = vmatpush1.msra.mxu0 0.0
    %704 = vmatprep.subr.mxu0 0.0
    %705 = vmatpush1.msra.mxu0 0.0
    %706 = vmatprep.subr.mxu0 0.0
    %707 = vmatpush1.msra.mxu0 0.0
    %708 = vmatprep.subr.mxu0 0.0
    %709 = vmatpush1.msra.mxu0 0.0
    %710 = vmatprep.subr.mxu0 0.0
    %711 = vmatpush1.msra.mxu0 0.0
    %712 = vmatprep.subr.mxu0 0.0
    %713 = vmatpush1.msra.mxu0 0.0
    %714 = vmatprep.subr.mxu0 0.0
    %715 = vmatpush1.msra.mxu0 0.0
    %716 = vmatprep.mubr.f32.mxu0 0.0
    %717 = vmatmul.mubr.f32.gmra.mrb[0].mxu0 %v650
    %v718 = vpop.f32.mrb[0].mxu0
    %v719 = vadd.f32 0.0, %v718
    %v720 = vpop.f32.mrb[0].mxu0
    %721 = vdwg.mxu0
    %v722 = vlaneseq
    %v723 = vshrl.u32 %v722, 7
    %v724 = vsub.s32 2, %v723
    %v725 = vrot.slane %v130, %v724
    %v727 = vsel %vm135, %v630, 0
    %v730 = vsel %vm135, %v719, 0
    %732 = vmatprep.subr.mxu0 0.0
    %733 = vmatpush1.msra.mxu0 %v126
    %734 = vmatprep.subr.mxu0 0.0
    %735 = vmatpush1.msra.mxu0 %v127
    %736 = vmatprep.subr.mxu0 0.0
    %737 = vmatpush1.msra.mxu0 %v128
    %738 = vmatprep.subr.mxu0 0.0
    %739 = vmatpush1.msra.mxu0 %v129
    %740 = vmatprep.subr.mxu0 0.0
    %741 = vmatpush1.msra.mxu0 0.0
    %742 = vmatprep.subr.mxu0 0.0
    %743 = vmatpush1.msra.mxu0 0.0
    %744 = vmatprep.subr.mxu0 0.0
    %745 = vmatpush1.msra.mxu0 0.0
    %746 = vmatprep.subr.mxu0 0.0
    %747 = vmatpush1.msra.mxu0 0.0
    %748 = vmatprep.subr.mxu0 0.0
    %749 = vmatpush1.msra.mxu0 0.0
    %750 = vmatprep.subr.mxu0 0.0
    %751 = vmatpush1.msra.mxu0 0.0
    %752 = vmatprep.subr.mxu0 0.0
    %753 = vmatpush1.msra.mxu0 0.0
    %754 = vmatprep.subr.mxu0 0.0
    %755 = vmatpush1.msra.mxu0 0.0
    %756 = vmatprep.subr.mxu0 0.0
    %757 = vmatpush1.msra.mxu0 0.0
    %758 = vmatprep.subr.mxu0 0.0
    %759 = vmatpush1.msra.mxu0 0.0
    %760 = vmatprep.subr.mxu0 0.0
    %761 = vmatpush1.msra.mxu0 0.0
    %762 = vmatprep.subr.mxu0 0.0
    %763 = vmatpush1.msra.mxu0 0.0
    %764 = vmatprep.subr.mxu0 0.0
    %765 = vmatpush1.msra.mxu0 0.0
    %766 = vmatprep.subr.mxu0 0.0
    %767 = vmatpush1.msra.mxu0 0.0
    %768 = vmatprep.subr.mxu0 0.0
    %769 = vmatpush1.msra.mxu0 0.0
    %770 = vmatprep.subr.mxu0 0.0
    %771 = vmatpush1.msra.mxu0 0.0
    %772 = vmatprep.subr.mxu0 0.0
    %773 = vmatpush1.msra.mxu0 0.0
    %774 = vmatprep.subr.mxu0 0.0
    %775 = vmatpush1.msra.mxu0 0.0
    %776 = vmatprep.subr.mxu0 0.0
    %777 = vmatpush1.msra.mxu0 0.0
    %778 = vmatprep.subr.mxu0 0.0
    %779 = vmatpush1.msra.mxu0 0.0
    %780 = vmatprep.subr.mxu0 0.0
    %781 = vmatpush1.msra.mxu0 0.0
    %782 = vmatprep.subr.mxu0 0.0
    %783 = vmatpush1.msra.mxu0 0.0
    %784 = vmatprep.subr.mxu0 0.0
    %785 = vmatpush1.msra.mxu0 0.0
    %786 = vmatprep.subr.mxu0 0.0
    %787 = vmatpush1.msra.mxu0 0.0
    %788 = vmatprep.subr.mxu0 0.0
    %789 = vmatpush1.msra.mxu0 0.0
    %790 = vmatprep.subr.mxu0 0.0
    %791 = vmatpush1.msra.mxu0 0.0
    %792 = vmatprep.subr.mxu0 0.0
    %793 = vmatpush1.msra.mxu0 0.0
    %794 = vmatprep.subr.mxu0 0.0
    %795 = vmatpush1.msra.mxu0 0.0
    %796 = vmatprep.mubr.f32.mxu0 0.0
    %797 = vmatmul.mubr.f32.gmra.mrb[0].mxu0 %v727
    %v798 = vpop.f32.mrb[0].mxu0
    %v799 = vadd.f32 %v725, %v798
    %v800 = vpop.f32.mrb[0].mxu0
    %801 = vmatprep.mubr.f32.mxu0 0.0
    %802 = vmatmul.mubr.f32.gmra.mrb[0].mxu0 %v730
    %v803 = vpop.f32.mrb[0].mxu0
    %v804 = vadd.f32 %v725, %v803
    %v805 = vpop.f32.mrb[0].mxu0
    %806 = vdwg.mxu0
    %v807 = vadd.f32 %v108, %v799
    %v808 = vadd.f32 %v109, %v804
    %v809 = vsel %vm135, %v807, 0.0
    %810 = vadd.xlane.f32.xlu0 %v809
    %v811 = vpop.xlane.xlu0 %810
    %v812 = vsel %vm135, %v808, 0.0
    %813 = vadd.xlane.f32.xlu0 %v812
    %v814 = vpop.xlane.xlu0 %813
    %v815 = vrcp.pop 32.0
    %v816 = vmul.f32 %v811, %v815
    %v817 = vmul.f32 %v814, %v815
    %v818 = vsub.f32 %v807, %v816
    %v819 = vsub.f32 %v808, %v817
    %v820 = vmul.f32 %v818, %v818
    %v821 = vmul.f32 %v819, %v819
    %v822 = vsel %vm135, %v820, 0.0
    %823 = vadd.xlane.f32.xlu0 %v822
    %v824 = vpop.xlane.xlu0 %823
    %v825 = vsel %vm135, %v821, 0.0
    %826 = vadd.xlane.f32.xlu0 %v825
    %v827 = vpop.xlane.xlu0 %826
    %v828 = vmul.f32 %v824, %v815
    %v829 = vmul.f32 %v827, %v815
    %v830 = vadd.f32 %v828, 1e-05
    %v831 = vadd.f32 %v829, 1e-05
    %v832 = vrsqrt.pop %v830
    %v833 = vrsqrt.pop %v831
    %v834 = vmul.f32 %v818, %v832
    %v835 = vmul.f32 %v819, %v833
    %v836 = vlaneseq
    %v837 = vshrl.u32 %v836, 7
    %v838 = vsub.s32 3, %v837
    %v839 = vrot.slane %v130, %v838
    %v840 = vmul.f32 %v834, %v839
    %v841 = vmul.f32 %v835, %v839
    %v842 = vlaneseq
    %v843 = vshrl.u32 %v842, 7
    %v844 = vsub.s32 4, %v843
    %v845 = vrot.slane %v130, %v844
    %v846 = vadd.f32 %v840, %v845
    %v847 = vadd.f32 %v841, %v845
    %v848 = vlaneseq
    %v849 = vshrl.u32 %v848, 7
    %v850 = vsub.s32 1, %v849
    %v851 = vrot.slane %v130, %v850
    %v853 = vsel %vm135, %v846, 0
    %v856 = vsel %vm135, %v847, 0
    %858 = vmatprep.subr.mxu0 0.0
    %859 = vmatpush1.msra.mxu0 %v122
    %860 = vmatprep.subr.mxu0 0.0
    %861 = vmatpush1.msra.mxu0 %v123
    %862 = vmatprep.subr.mxu0 0.0
    %863 = vmatpush1.msra.mxu0 %v124
    %864 = vmatprep.subr.mxu0 0.0
    %865 = vmatpush1.msra.mxu0 %v125
    %866 = vmatprep.subr.mxu0 0.0
    %867 = vmatpush1.msra.mxu0 0.0
    %868 = vmatprep.subr.mxu0 0.0
    %869 = vmatpush1.msra.mxu0 0.0
    %870 = vmatprep.subr.mxu0 0.0
    %871 = vmatpush1.msra.mxu0 0.0
    %872 = vmatprep.subr.mxu0 0.0
    %873 = vmatpush1.msra.mxu0 0.0
    %874 = vmatprep.subr.mxu0 0.0
    %875 = vmatpush1.msra.mxu0 0.0
    %876 = vmatprep.subr.mxu0 0.0
    %877 = vmatpush1.msra.mxu0 0.0
    %878 = vmatprep.subr.mxu0 0.0
    %879 = vmatpush1.msra.mxu0 0.0
    %880 = vmatprep.subr.mxu0 0.0
    %881 = vmatpush1.msra.mxu0 0.0
    %882 = vmatprep.subr.mxu0 0.0
    %883 = vmatpush1.msra.mxu0 0.0
    %884 = vmatprep.subr.mxu0 0.0
    %885 = vmatpush1.msra.mxu0 0.0
    %886 = vmatprep.subr.mxu0 0.0
    %887 = vmatpush1.msra.mxu0 0.0
    %888 = vmatprep.subr.mxu0 0.0
    %889 = vmatpush1.msra.mxu0 0.0
    %890 = vmatprep.subr.mxu0 0.0
    %891 = vmatpush1.msra.mxu0 0.0
    %892 = vmatprep.subr.mxu0 0.0
    %893 = vmatpush1.msra.mxu0 0.0
    %894 = vmatprep.subr.mxu0 0.0
    %895 = vmatpush1.msra.mxu0 0.0
    %896 = vmatprep.subr.mxu0 0.0
    %897 = vmatpush1.msra.mxu0 0.0
    %898 = vmatprep.subr.mxu0 0.0
    %899 = vmatpush1.msra.mxu0 0.0
    %900 = vmatprep.subr.mxu0 0.0
    %901 = vmatpush1.msra.mxu0 0.0
    %902 = vmatprep.subr.mxu0 0.0
    %903 = vmatpush1.msra.mxu0 0.0
    %904 = vmatprep.subr.mxu0 0.0
    %905 = vmatpush1.msra.mxu0 0.0
    %906 = vmatprep.subr.mxu0 0.0
    %907 = vmatpush1.msra.mxu0 0.0
    %908 = vmatprep.subr.mxu0 0.0
    %909 = vmatpush1.msra.mxu0 0.0
    %910 = vmatprep.subr.mxu0 0.0
    %911 = vmatpush1.msra.mxu0 0.0
    %912 = vmatprep.subr.mxu0 0.0
    %913 = vmatpush1.msra.mxu0 0.0
    %914 = vmatprep.subr.mxu0 0.0
    %915 = vmatpush1.msra.mxu0 0.0
    %916 = vmatprep.subr.mxu0 0.0
    %917 = vmatpush1.msra.mxu0 0.0
    %918 = vmatprep.subr.mxu0 0.0
    %919 = vmatpush1.msra.mxu0 0.0
    %920 = vmatprep.subr.mxu0 0.0
    %921 = vmatpush1.msra.mxu0 0.0
    %922 = vmatprep.mubr.f32.mxu0 0.0
    %923 = vmatmul.mubr.f32.gmra.mrb[0].mxu0 %v853
    %v924 = vpop.f32.mrb[0].mxu0
    %v925 = vadd.f32 %v851, %v924
    %v926 = vpop.f32.mrb[0].mxu0
    %927 = vmatprep.mubr.f32.mxu0 0.0
    %928 = vmatmul.mubr.f32.gmra.mrb[0].mxu0 %v856
    %v929 = vpop.f32.mrb[0].mxu0
    %v930 = vadd.f32 %v851, %v929
    %v931 = vpop.f32.mrb[0].mxu0
    %932 = vdwg.mxu0
    %v933 = vmax.f32 %v925, 0.0
    %v934 = vmax.f32 %v930, 0.0
    %v935 = vld [vmem:[%s4] sm:$0xff]
    %v936 = vld [vmem:[%s4 + $0x8] sm:$0xff]
    %v937 = vld [vmem:[%s4 + $0x10] sm:$0xff]
    %v938 = vld [vmem:[%s4 + $0x18] sm:$0xff]
    %v939 = vld [vmem:[%s4 + $0x20] sm:$0xff]
    %v940 = vld [vmem:[%s4 + $0x28] sm:$0xff]
    %v941 = vld [vmem:[%s4 + $0x30] sm:$0xff]
    %v942 = vld [vmem:[%s4 + $0x38] sm:$0xff]
    %v943 = vld [vmem:[%s4 + $0x40] sm:$0xff]
    %v944 = vld [vmem:[%s4 + $0x48] sm:$0xff]
    %v945 = vld [vmem:[%s4 + $0x50] sm:$0xff]
    %v946 = vld [vmem:[%s4 + $0x58] sm:$0xff]
    %v947 = vld [vmem:[%s4 + $0x60] sm:$0xff]
    %v948 = vld [vmem:[%s4 + $0x68] sm:$0xff]
    %v949 = vld [vmem:[%s4 + $0x70] sm:$0xff]
    %v950 = vld [vmem:[%s4 + $0x78] sm:$0xff]
    %v951 = vlaneseq
    %v952 = vshrl.u32 %v951, 7
    %v953 = vsub.s32 5, %v952
    %v954 = vrot.slane %v130, %v953
    %955 = vmatprep.subr.mxu0 0.0
    %956 = vmatpush1.msra.mxu0 %v935
    %957 = vmatprep.subr.mxu0 0.0
    %958 = vmatpush1.msra.mxu0 %v936
    %959 = vmatprep.subr.mxu0 0.0
    %960 = vmatpush1.msra.mxu0 %v937
    %961 = vmatprep.subr.mxu0 0.0
    %962 = vmatpush1.msra.mxu0 %v938
    %963 = vmatprep.subr.mxu0 0.0
    %964 = vmatpush1.msra.mxu0 %v939
    %965 = vmatprep.subr.mxu0 0.0
    %966 = vmatpush1.msra.mxu0 %v940
    %967 = vmatprep.subr.mxu0 0.0
    %968 = vmatpush1.msra.mxu0 %v941
    %969 = vmatprep.subr.mxu0 0.0
    %970 = vmatpush1.msra.mxu0 %v942
    %971 = vmatprep.subr.mxu0 0.0
    %972 = vmatpush1.msra.mxu0 %v943
    %973 = vmatprep.subr.mxu0 0.0
    %974 = vmatpush1.msra.mxu0 %v944
    %975 = vmatprep.subr.mxu0 0.0
    %976 = vmatpush1.msra.mxu0 %v945
    %977 = vmatprep.subr.mxu0 0.0
    %978 = vmatpush1.msra.mxu0 %v946
    %979 = vmatprep.subr.mxu0 0.0
    %980 = vmatpush1.msra.mxu0 %v947
    %981 = vmatprep.subr.mxu0 0.0
    %982 = vmatpush1.msra.mxu0 %v948
    %983 = vmatprep.subr.mxu0 0.0
    %984 = vmatpush1.msra.mxu0 %v949
    %985 = vmatprep.subr.mxu0 0.0
    %986 = vmatpush1.msra.mxu0 %v950
    %987 = vmatprep.subr.mxu0 0.0
    %988 = vmatpush1.msra.mxu0 0.0
    %989 = vmatprep.subr.mxu0 0.0
    %990 = vmatpush1.msra.mxu0 0.0
    %991 = vmatprep.subr.mxu0 0.0
    %992 = vmatpush1.msra.mxu0 0.0
    %993 = vmatprep.subr.mxu0 0.0
    %994 = vmatpush1.msra.mxu0 0.0
    %995 = vmatprep.subr.mxu0 0.0
    %996 = vmatpush1.msra.mxu0 0.0
    %997 = vmatprep.subr.mxu0 0.0
    %998 = vmatpush1.msra.mxu0 0.0
    %999 = vmatprep.subr.mxu0 0.0
    %1000 = vmatpush1.msra.mxu0 0.0
    %1001 = vmatprep.subr.mxu0 0.0
    %1002 = vmatpush1.msra.mxu0 0.0
    %1003 = vmatprep.subr.mxu0 0.0
    %1004 = vmatpush1.msra.mxu0 0.0
    %1005 = vmatprep.subr.mxu0 0.0
    %1006 = vmatpush1.msra.mxu0 0.0
    %1007 = vmatprep.subr.mxu0 0.0
    %1008 = vmatpush1.msra.mxu0 0.0
    %1009 = vmatprep.subr.mxu0 0.0
    %1010 = vmatpush1.msra.mxu0 0.0
    %1011 = vmatprep.subr.mxu0 0.0
    %1012 = vmatpush1.msra.mxu0 0.0
    %1013 = vmatprep.subr.mxu0 0.0
    %1014 = vmatpush1.msra.mxu0 0.0
    %1015 = vmatprep.subr.mxu0 0.0
    %1016 = vmatpush1.msra.mxu0 0.0
    %1017 = vmatprep.subr.mxu0 0.0
    %1018 = vmatpush1.msra.mxu0 0.0
    %1019 = vmatprep.mubr.f32.mxu0 0.0
    %1020 = vmatmul.mubr.f32.gmra.mrb[0].mxu0 %v933
    %v1021 = vpop.f32.mrb[0].mxu0
    %v1022 = vadd.f32 %v954, %v1021
    %v1023 = vpop.f32.mrb[0].mxu0
    %1024 = vmatprep.mubr.f32.mxu0 0.0
    %1025 = vmatmul.mubr.f32.gmra.mrb[0].mxu0 %v934
    %v1026 = vpop.f32.mrb[0].mxu0
    %v1027 = vadd.f32 %v954, %v1026
    %v1028 = vpop.f32.mrb[0].mxu0
    %1029 = vdwg.mxu0
    %v1030 = vadd.f32 %v846, %v1022
    %v1031 = vadd.f32 %v847, %v1027
    %v1032 = vsel %vm135, %v1030, 0.0
    %1033 = vadd.xlane.f32.xlu0 %v1032
    %v1034 = vpop.xlane.xlu0 %1033
    %v1035 = vsel %vm135, %v1031, 0.0
    %1036 = vadd.xlane.f32.xlu0 %v1035
    %v1037 = vpop.xlane.xlu0 %1036
    %v1038 = vmul.f32 %v1034, %v815
    %v1039 = vmul.f32 %v1037, %v815
    %v1040 = vsub.f32 %v1030, %v1038
    %v1041 = vsub.f32 %v1031, %v1039
    %v1042 = vmul.f32 %v1040, %v1040
    %v1043 = vmul.f32 %v1041, %v1041
    %v1044 = vsel %vm135, %v1042, 0.0
    %1045 = vadd.xlane.f32.xlu0 %v1044
    %v1046 = vpop.xlane.xlu0 %1045
    %v1047 = vsel %vm135, %v1043, 0.0
    %1048 = vadd.xlane.f32.xlu0 %v1047
    %v1049 = vpop.xlane.xlu0 %1048
    %v1050 = vmul.f32 %v1046, %v815
    %v1051 = vmul.f32 %v1049, %v815
    %v1052 = vadd.f32 %v1050, 1e-05
    %v1053 = vadd.f32 %v1051, 1e-05
    %v1054 = vrsqrt.pop %v1052
    %v1055 = vrsqrt.pop %v1053
    %v1056 = vmul.f32 %v1040, %v1054
    %v1057 = vmul.f32 %v1041, %v1055
    %v1058 = vlaneseq
    %v1059 = vshrl.u32 %v1058, 7
    %v1060 = vsub.s32 6, %v1059
    %v1061 = vrot.slane %v130, %v1060
    %v1062 = vmul.f32 %v1056, %v1061
    %v1063 = vmul.f32 %v1057, %v1061
    %v1064 = vlaneseq
    %v1065 = vshrl.u32 %v1064, 7
    %v1066 = vsub.s32 7, %v1065
    %v1067 = vrot.slane %v130, %v1066
    %v1068 = vadd.f32 %v1062, %v1067
    %v1069 = vadd.f32 %v1063, %v1067
    %s1070 = scalar_lea.vmem %s3, 120
    %v1071 = vld [vmem:[%s1070] sm:$0xff]
    %v1072 = vld [vmem:[%s1070 + $0x18] sm:$0xff]
    %v1073 = vld [vmem:[%s1070 + $0x30] sm:$0xff]
    %v1074 = vld [vmem:[%s1070 + $0x48] sm:$0xff]
    %v1075 = vld [vmem:[%s1070 + $0x8] sm:$0xff]
    %v1076 = vld [vmem:[%s1070 + $0x20] sm:$0xff]
    %v1077 = vld [vmem:[%s1070 + $0x38] sm:$0xff]
    %v1078 = vld [vmem:[%s1070 + $0x50] sm:$0xff]
    %v1079 = vld [vmem:[%s1070 + $0x10] sm:$0xff]
    %v1080 = vld [vmem:[%s1070 + $0x28] sm:$0xff]
    %v1081 = vld [vmem:[%s1070 + $0x40] sm:$0xff]
    %v1082 = vld [vmem:[%s1070 + $0x58] sm:$0xff]
    %v1083 = vld [vmem:[%s1070 + $0x60] sm:$0xff]
    %v1084 = vlaneseq
    %v1085 = vshrl.u32 %v1084, 7
    %v1086 = vsub.s32 0, %v1085
    %v1087 = vrot.slane %v1083, %v1086
    %v1089 = vsel %vm135, %v1068, 0
    %v1092 = vsel %vm135, %v1069, 0
    %1094 = vmatprep.subr.mxu0 0.0
    %1095 = vmatpush1.msra.mxu0 %v1071
    %1096 = vmatprep.subr.mxu0 0.0
    %1097 = vmatpush1.msra.mxu0 %v1072
    %1098 = vmatprep.subr.mxu0 0.0
    %1099 = vmatpush1.msra.mxu0 %v1073
    %1100 = vmatprep.subr.mxu0 0.0
    %1101 = vmatpush1.msra.mxu0 %v1074
    %1102 = vmatprep.subr.mxu0 0.0
    %1103 = vmatpush1.msra.mxu0 0.0
    %1104 = vmatprep.subr.mxu0 0.0
    %1105 = vmatpush1.msra.mxu0 0.0
    %1106 = vmatprep.subr.mxu0 0.0
    %1107 = vmatpush1.msra.mxu0 0.0
    %1108 = vmatprep.subr.mxu0 0.0
    %1109 = vmatpush1.msra.mxu0 0.0
    %1110 = vmatprep.subr.mxu0 0.0
    %1111 = vmatpush1.msra.mxu0 0.0
    %1112 = vmatprep.subr.mxu0 0.0
    %1113 = vmatpush1.msra.mxu0 0.0
    %1114 = vmatprep.subr.mxu0 0.0
    %1115 = vmatpush1.msra.mxu0 0.0
    %1116 = vmatprep.subr.mxu0 0.0
    %1117 = vmatpush1.msra.mxu0 0.0
    %1118 = vmatprep.subr.mxu0 0.0
    %1119 = vmatpush1.msra.mxu0 0.0
    %1120 = vmatprep.subr.mxu0 0.0
    %1121 = vmatpush1.msra.mxu0 0.0
    %1122 = vmatprep.subr.mxu0 0.0
    %1123 = vmatpush1.msra.mxu0 0.0
    %1124 = vmatprep.subr.mxu0 0.0
    %1125 = vmatpush1.msra.mxu0 0.0
    %1126 = vmatprep.subr.mxu0 0.0
    %1127 = vmatpush1.msra.mxu0 0.0
    %1128 = vmatprep.subr.mxu0 0.0
    %1129 = vmatpush1.msra.mxu0 0.0
    %1130 = vmatprep.subr.mxu0 0.0
    %1131 = vmatpush1.msra.mxu0 0.0
    %1132 = vmatprep.subr.mxu0 0.0
    %1133 = vmatpush1.msra.mxu0 0.0
    %1134 = vmatprep.subr.mxu0 0.0
    %1135 = vmatpush1.msra.mxu0 0.0
    %1136 = vmatprep.subr.mxu0 0.0
    %1137 = vmatpush1.msra.mxu0 0.0
    %1138 = vmatprep.subr.mxu0 0.0
    %1139 = vmatpush1.msra.mxu0 0.0
    %1140 = vmatprep.subr.mxu0 0.0
    %1141 = vmatpush1.msra.mxu0 0.0
    %1142 = vmatprep.subr.mxu0 0.0
    %1143 = vmatpush1.msra.mxu0 0.0
    %1144 = vmatprep.subr.mxu0 0.0
    %1145 = vmatpush1.msra.mxu0 0.0
    %1146 = vmatprep.subr.mxu0 0.0
    %1147 = vmatpush1.msra.mxu0 0.0
    %1148 = vmatprep.subr.mxu0 0.0
    %1149 = vmatpush1.msra.mxu0 0.0
    %1150 = vmatprep.subr.mxu0 0.0
    %1151 = vmatpush1.msra.mxu0 0.0
    %1152 = vmatprep.subr.mxu0 0.0
    %1153 = vmatpush1.msra.mxu0 0.0
    %1154 = vmatprep.subr.mxu0 0.0
    %1155 = vmatpush1.msra.mxu0 0.0
    %1156 = vmatprep.subr.mxu0 0.0
    %1157 = vmatpush1.msra.mxu0 0.0
    %1158 = vmatprep.mubr.f32.mxu0 0.0
    %1159 = vmatmul.mubr.f32.gmra.mrb[0].mxu0 %v1089
    %v1160 = vpop.f32.mrb[0].mxu0
    %v1161 = vadd.f32 %v1087, %v1160
    %v1162 = vpop.f32.mrb[0].mxu0
    %1163 = vmatprep.mubr.f32.mxu0 0.0
    %1164 = vmatmul.mubr.f32.gmra.mrb[0].mxu0 %v1092
    %v1165 = vpop.f32.mrb[0].mxu0
    %v1166 = vadd.f32 %v1087, %v1165
    %v1167 = vpop.f32.mrb[0].mxu0
    %1168 = vdwg.mxu0
    %v1169 = vmul.f32 %v1161, %v222
    %v1170 = vmul.f32 %v1161, %v224
    %v1171 = vmul.f32 %v1161, %v226
    %v1172 = vmul.f32 %v1161, %v228
    %v1173 = vmul.f32 %v1166, %v222
    %v1174 = vmul.f32 %v1166, %v224
    %v1175 = vmul.f32 %v1166, %v226
    %v1176 = vmul.f32 %v1166, %v228
    %v1177 = vmul.f32 %v1161, %v242
    %v1178 = vmul.f32 %v1161, %v244
    %v1179 = vmul.f32 %v1161, %v246
    %v1180 = vmul.f32 %v1161, %v248
    %v1181 = vmul.f32 %v1166, %v242
    %v1182 = vmul.f32 %v1166, %v244
    %v1183 = vmul.f32 %v1166, %v246
    %v1184 = vmul.f32 %v1166, %v248
    %1189 = vrot.lane.b32.xlu0 %v1169, 96
    %v1190 = vpop.permute.xlu0 %1189
    %1191 = vrot.lane.b32.xlu0 %v1170, 96
    %v1192 = vpop.permute.xlu0 %1191
    %1193 = vrot.lane.b32.xlu0 %v1171, 96
    %v1194 = vpop.permute.xlu0 %1193
    %1195 = vrot.lane.b32.xlu0 %v1172, 96
    %v1196 = vpop.permute.xlu0 %1195
    %v1198 = vsel %vm135, %v1161, 0
    %v1200 = vsel %vm135, %v1190, 0
    %v1202 = vsel %vm135, %v1192, 0
    %v1204 = vsel %vm135, %v1194, 0
    %v1206 = vsel %vm135, %v1196, 0
    %1208 = vmatprep.subr.mxu0 0.0
    %1209 = vmatpush1.xpose.msra.mxu0 %v1200
    %1210 = vmatprep.subr.mxu0 0.0
    %1211 = vmatpush1.xpose.msra.mxu0 %v1202
    %1212 = vmatprep.subr.mxu0 0.0
    %1213 = vmatpush1.xpose.msra.mxu0 %v1204
    %1214 = vmatprep.subr.mxu0 0.0
    %1215 = vmatpush1.xpose.msra.mxu0 %v1206
    %1216 = vmatprep.subr.mxu0 0.0
    %1217 = vmatpush1.xpose.msra.mxu0 0.0
    %1218 = vmatprep.subr.mxu0 0.0
    %1219 = vmatpush1.xpose.msra.mxu0 0.0
    %1220 = vmatprep.subr.mxu0 0.0
    %1221 = vmatpush1.xpose.msra.mxu0 0.0
    %1222 = vmatprep.subr.mxu0 0.0
    %1223 = vmatpush1.xpose.msra.mxu0 0.0
    %1224 = vmatprep.subr.mxu0 0.0
    %1225 = vmatpush1.xpose.msra.mxu0 0.0
    %1226 = vmatprep.subr.mxu0 0.0
    %1227 = vmatpush1.xpose.msra.mxu0 0.0
    %1228 = vmatprep.subr.mxu0 0.0
    %1229 = vmatpush1.xpose.msra.mxu0 0.0
    %1230 = vmatprep.subr.mxu0 0.0
    %1231 = vmatpush1.xpose.msra.mxu0 0.0
    %1232 = vmatprep.subr.mxu0 0.0
    %1233 = vmatpush1.xpose.msra.mxu0 0.0
    %1234 = vmatprep.subr.mxu0 0.0
    %1235 = vmatpush1.xpose.msra.mxu0 0.0
    %1236 = vmatprep.subr.mxu0 0.0
    %1237 = vmatpush1.xpose.msra.mxu0 0.0
    %1238 = vmatprep.subr.mxu0 0.0
    %1239 = vmatpush1.xpose.msra.mxu0 0.0
    %1240 = vmatprep.subr.mxu0 0.0
    %1241 = vmatpush1.xpose.msra.mxu0 0.0
    %1242 = vmatprep.subr.mxu0 0.0
    %1243 = vmatpush1.xpose.msra.mxu0 0.0
    %1244 = vmatprep.subr.mxu0 0.0
    %1245 = vmatpush1.xpose.msra.mxu0 0.0
    %1246 = vmatprep.subr.mxu0 0.0
    %1247 = vmatpush1.xpose.msra.mxu0 0.0
    %1248 = vmatprep.subr.mxu0 0.0
    %1249 = vmatpush1.xpose.msra.mxu0 0.0
    %1250 = vmatprep.subr.mxu0 0.0
    %1251 = vmatpush1.xpose.msra.mxu0 0.0
    %1252 = vmatprep.subr.mxu0 0.0
    %1253 = vmatpush1.xpose.msra.mxu0 0.0
    %1254 = vmatprep.subr.mxu0 0.0
    %1255 = vmatpush1.xpose.msra.mxu0 0.0
    %1256 = vmatprep.subr.mxu0 0.0
    %1257 = vmatpush1.xpose.msra.mxu0 0.0
    %1258 = vmatprep.subr.mxu0 0.0
    %1259 = vmatpush1.xpose.msra.mxu0 0.0
    %1260 = vmatprep.subr.mxu0 0.0
    %1261 = vmatpush1.xpose.msra.mxu0 0.0
    %1262 = vmatprep.subr.mxu0 0.0
    %1263 = vmatpush1.xpose.msra.mxu0 0.0
    %1264 = vmatprep.subr.mxu0 0.0
    %1265 = vmatpush1.xpose.msra.mxu0 0.0
    %1266 = vmatprep.subr.mxu0 0.0
    %1267 = vmatpush1.xpose.msra.mxu0 0.0
    %1268 = vmatprep.subr.mxu0 0.0
    %1269 = vmatpush1.xpose.msra.mxu0 0.0
    %1270 = vmatprep.subr.mxu0 0.0
    %1271 = vmatpush1.xpose.msra.mxu0 0.0
    %1272 = vmatprep.mubr.f32.mxu0 0.0
    %1273 = vmatmul.mubr.f32.gmra.mrb[0].mxu0 %v1198
    %v1274 = vpop.f32.mrb[0].mxu0
    %v1275 = vadd.f32 0.0, %v1274
    %v1276 = vpop.f32.mrb[0].mxu0
    %1277 = vdwg.mxu0
    %1282 = vrot.lane.b32.xlu0 %v1173, 96
    %v1283 = vpop.permute.xlu0 %1282
    %1284 = vrot.lane.b32.xlu0 %v1174, 96
    %v1285 = vpop.permute.xlu0 %1284
    %1286 = vrot.lane.b32.xlu0 %v1175, 96
    %v1287 = vpop.permute.xlu0 %1286
    %1288 = vrot.lane.b32.xlu0 %v1176, 96
    %v1289 = vpop.permute.xlu0 %1288
    %v1291 = vsel %vm135, %v1166, 0
    %v1293 = vsel %vm135, %v1283, 0
    %v1295 = vsel %vm135, %v1285, 0
    %v1297 = vsel %vm135, %v1287, 0
    %v1299 = vsel %vm135, %v1289, 0
    %1301 = vmatprep.subr.mxu0 0.0
    %1302 = vmatpush1.xpose.msra.mxu0 %v1293
    %1303 = vmatprep.subr.mxu0 0.0
    %1304 = vmatpush1.xpose.msra.mxu0 %v1295
    %1305 = vmatprep.subr.mxu0 0.0
    %1306 = vmatpush1.xpose.msra.mxu0 %v1297
    %1307 = vmatprep.subr.mxu0 0.0
    %1308 = vmatpush1.xpose.msra.mxu0 %v1299
    %1309 = vmatprep.subr.mxu0 0.0
    %1310 = vmatpush1.xpose.msra.mxu0 0.0
    %1311 = vmatprep.subr.mxu0 0.0
    %1312 = vmatpush1.xpose.msra.mxu0 0.0
    %1313 = vmatprep.subr.mxu0 0.0
    %1314 = vmatpush1.xpose.msra.mxu0 0.0
    %1315 = vmatprep.subr.mxu0 0.0
    %1316 = vmatpush1.xpose.msra.mxu0 0.0
    %1317 = vmatprep.subr.mxu0 0.0
    %1318 = vmatpush1.xpose.msra.mxu0 0.0
    %1319 = vmatprep.subr.mxu0 0.0
    %1320 = vmatpush1.xpose.msra.mxu0 0.0
    %1321 = vmatprep.subr.mxu0 0.0
    %1322 = vmatpush1.xpose.msra.mxu0 0.0
    %1323 = vmatprep.subr.mxu0 0.0
    %1324 = vmatpush1.xpose.msra.mxu0 0.0
    %1325 = vmatprep.subr.mxu0 0.0
    %1326 = vmatpush1.xpose.msra.mxu0 0.0
    %1327 = vmatprep.subr.mxu0 0.0
    %1328 = vmatpush1.xpose.msra.mxu0 0.0
    %1329 = vmatprep.subr.mxu0 0.0
    %1330 = vmatpush1.xpose.msra.mxu0 0.0
    %1331 = vmatprep.subr.mxu0 0.0
    %1332 = vmatpush1.xpose.msra.mxu0 0.0
    %1333 = vmatprep.subr.mxu0 0.0
    %1334 = vmatpush1.xpose.msra.mxu0 0.0
    %1335 = vmatprep.subr.mxu0 0.0
    %1336 = vmatpush1.xpose.msra.mxu0 0.0
    %1337 = vmatprep.subr.mxu0 0.0
    %1338 = vmatpush1.xpose.msra.mxu0 0.0
    %1339 = vmatprep.subr.mxu0 0.0
    %1340 = vmatpush1.xpose.msra.mxu0 0.0
    %1341 = vmatprep.subr.mxu0 0.0
    %1342 = vmatpush1.xpose.msra.mxu0 0.0
    %1343 = vmatprep.subr.mxu0 0.0
    %1344 = vmatpush1.xpose.msra.mxu0 0.0
    %1345 = vmatprep.subr.mxu0 0.0
    %1346 = vmatpush1.xpose.msra.mxu0 0.0
    %1347 = vmatprep.subr.mxu0 0.0
    %1348 = vmatpush1.xpose.msra.mxu0 0.0
    %1349 = vmatprep.subr.mxu0 0.0
    %1350 = vmatpush1.xpose.msra.mxu0 0.0
    %1351 = vmatprep.subr.mxu0 0.0
    %1352 = vmatpush1.xpose.msra.mxu0 0.0
    %1353 = vmatprep.subr.mxu0 0.0
    %1354 = vmatpush1.xpose.msra.mxu0 0.0
    %1355 = vmatprep.subr.mxu0 0.0
    %1356 = vmatpush1.xpose.msra.mxu0 0.0
    %1357 = vmatprep.subr.mxu0 0.0
    %1358 = vmatpush1.xpose.msra.mxu0 0.0
    %1359 = vmatprep.subr.mxu0 0.0
    %1360 = vmatpush1.xpose.msra.mxu0 0.0
    %1361 = vmatprep.subr.mxu0 0.0
    %1362 = vmatpush1.xpose.msra.mxu0 0.0
    %1363 = vmatprep.subr.mxu0 0.0
    %1364 = vmatpush1.xpose.msra.mxu0 0.0
    %1365 = vmatprep.mubr.f32.mxu0 0.0
    %1366 = vmatmul.mubr.f32.gmra.mrb[0].mxu0 %v1291
    %v1367 = vpop.f32.mrb[0].mxu0
    %v1368 = vadd.f32 0.0, %v1367
    %v1369 = vpop.f32.mrb[0].mxu0
    %1370 = vdwg.mxu0
    %v1371 = vsel %vm135, %v1275, -inf
    %1372 = vmax.xlane.f32.xlu0 %v1371
    %v1373 = vpop.xlane.xlu0 %1372
    %v1374 = vsel %vm135, %v1368, -inf
    %1375 = vmax.xlane.f32.xlu0 %v1374
    %v1376 = vpop.xlane.xlu0 %1375
    %v1377 = vsub.f32 %v1275, %v1373
    %v1378 = vsub.f32 %v1368, %v1376
    %v1379 = vmul.f32 %v1377, 1.442695
    %v1380 = vpow.pop %v1379
    %v1381 = vmul.f32 %v1378, 1.442695
    %v1382 = vpow.pop %v1381
    %v1384 = vsel %vm135, %v1380, 0
    %v1387 = vsel %vm135, %v1382, 0
    %1389 = vmatprep.subr.mxu0 0.0
    %1390 = vmatpush1.msra.mxu0 %v114
    %1391 = vmatprep.subr.mxu0 0.0
    %1392 = vmatpush1.msra.mxu0 %v115
    %1393 = vmatprep.subr.mxu0 0.0
    %1394 = vmatpush1.msra.mxu0 %v116
    %1395 = vmatprep.subr.mxu0 0.0
    %1396 = vmatpush1.msra.mxu0 %v117
    %1397 = vmatprep.subr.mxu0 0.0
    %1398 = vmatpush1.msra.mxu0 0.0
    %1399 = vmatprep.subr.mxu0 0.0
    %1400 = vmatpush1.msra.mxu0 0.0
    %1401 = vmatprep.subr.mxu0 0.0
    %1402 = vmatpush1.msra.mxu0 0.0
    %1403 = vmatprep.subr.mxu0 0.0
    %1404 = vmatpush1.msra.mxu0 0.0
    %1405 = vmatprep.subr.mxu0 0.0
    %1406 = vmatpush1.msra.mxu0 0.0
    %1407 = vmatprep.subr.mxu0 0.0
    %1408 = vmatpush1.msra.mxu0 0.0
    %1409 = vmatprep.subr.mxu0 0.0
    %1410 = vmatpush1.msra.mxu0 0.0
    %1411 = vmatprep.subr.mxu0 0.0
    %1412 = vmatpush1.msra.mxu0 0.0
    %1413 = vmatprep.subr.mxu0 0.0
    %1414 = vmatpush1.msra.mxu0 0.0
    %1415 = vmatprep.subr.mxu0 0.0
    %1416 = vmatpush1.msra.mxu0 0.0
    %1417 = vmatprep.subr.mxu0 0.0
    %1418 = vmatpush1.msra.mxu0 0.0
    %1419 = vmatprep.subr.mxu0 0.0
    %1420 = vmatpush1.msra.mxu0 0.0
    %1421 = vmatprep.subr.mxu0 0.0
    %1422 = vmatpush1.msra.mxu0 0.0
    %1423 = vmatprep.subr.mxu0 0.0
    %1424 = vmatpush1.msra.mxu0 0.0
    %1425 = vmatprep.subr.mxu0 0.0
    %1426 = vmatpush1.msra.mxu0 0.0
    %1427 = vmatprep.subr.mxu0 0.0
    %1428 = vmatpush1.msra.mxu0 0.0
    %1429 = vmatprep.subr.mxu0 0.0
    %1430 = vmatpush1.msra.mxu0 0.0
    %1431 = vmatprep.subr.mxu0 0.0
    %1432 = vmatpush1.msra.mxu0 0.0
    %1433 = vmatprep.subr.mxu0 0.0
    %1434 = vmatpush1.msra.mxu0 0.0
    %1435 = vmatprep.subr.mxu0 0.0
    %1436 = vmatpush1.msra.mxu0 0.0
    %1437 = vmatprep.subr.mxu0 0.0
    %1438 = vmatpush1.msra.mxu0 0.0
    %1439 = vmatprep.subr.mxu0 0.0
    %1440 = vmatpush1.msra.mxu0 0.0
    %1441 = vmatprep.subr.mxu0 0.0
    %1442 = vmatpush1.msra.mxu0 0.0
    %1443 = vmatprep.subr.mxu0 0.0
    %1444 = vmatpush1.msra.mxu0 0.0
    %1445 = vmatprep.subr.mxu0 0.0
    %1446 = vmatpush1.msra.mxu0 0.0
    %1447 = vmatprep.subr.mxu0 0.0
    %1448 = vmatpush1.msra.mxu0 0.0
    %1449 = vmatprep.subr.mxu0 0.0
    %1450 = vmatpush1.msra.mxu0 0.0
    %1451 = vmatprep.subr.mxu0 0.0
    %1452 = vmatpush1.msra.mxu0 0.0
    %1453 = vmatprep.mubr.f32.mxu0 0.0
    %1454 = vmatmul.mubr.f32.gmra.mrb[0].mxu0 %v1384
    %v1455 = vpop.f32.mrb[0].mxu0
    %v1456 = vadd.f32 0.0, %v1455
    %v1457 = vpop.f32.mrb[0].mxu0
    %1458 = vmatprep.mubr.f32.mxu0 0.0
    %1459 = vmatmul.mubr.f32.gmra.mrb[0].mxu0 %v1387
    %v1460 = vpop.f32.mrb[0].mxu0
    %v1461 = vadd.f32 0.0, %v1460
    %v1462 = vpop.f32.mrb[0].mxu0
    %1463 = vdwg.mxu0
    %v1464 = vrcp.pop %v1456
    %v1465 = vrcp.pop %v1461
    %v1466 = vmul.f32 %v1380, %v1464
    %v1467 = vmul.f32 %v1382, %v1465
    %1472 = vrot.lane.b32.xlu0 %v1177, 64
    %v1473 = vpop.permute.xlu0 %1472
    %1474 = vrot.lane.b32.xlu0 %v1178, 64
    %v1475 = vpop.permute.xlu0 %1474
    %1476 = vrot.lane.b32.xlu0 %v1179, 64
    %v1477 = vpop.permute.xlu0 %1476
    %1478 = vrot.lane.b32.xlu0 %v1180, 64
    %v1479 = vpop.permute.xlu0 %1478
    %v1485 = vsel %vm135, %v1466, 0
    %1487 = vmatprep.subr.mxu0 0.0
    %1488 = vmatpush1.msra.mxu0 %v1473
    %1489 = vmatprep.subr.mxu0 0.0
    %1490 = vmatpush1.msra.mxu0 %v1475
    %1491 = vmatprep.subr.mxu0 0.0
    %1492 = vmatpush1.msra.mxu0 %v1477
    %1493 = vmatprep.subr.mxu0 0.0
    %1494 = vmatpush1.msra.mxu0 %v1479
    %1495 = vmatprep.subr.mxu0 0.0
    %1496 = vmatpush1.msra.mxu0 0.0
    %1497 = vmatprep.subr.mxu0 0.0
    %1498 = vmatpush1.msra.mxu0 0.0
    %1499 = vmatprep.subr.mxu0 0.0
    %1500 = vmatpush1.msra.mxu0 0.0
    %1501 = vmatprep.subr.mxu0 0.0
    %1502 = vmatpush1.msra.mxu0 0.0
    %1503 = vmatprep.subr.mxu0 0.0
    %1504 = vmatpush1.msra.mxu0 0.0
    %1505 = vmatprep.subr.mxu0 0.0
    %1506 = vmatpush1.msra.mxu0 0.0
    %1507 = vmatprep.subr.mxu0 0.0
    %1508 = vmatpush1.msra.mxu0 0.0
    %1509 = vmatprep.subr.mxu0 0.0
    %1510 = vmatpush1.msra.mxu0 0.0
    %1511 = vmatprep.subr.mxu0 0.0
    %1512 = vmatpush1.msra.mxu0 0.0
    %1513 = vmatprep.subr.mxu0 0.0
    %1514 = vmatpush1.msra.mxu0 0.0
    %1515 = vmatprep.subr.mxu0 0.0
    %1516 = vmatpush1.msra.mxu0 0.0
    %1517 = vmatprep.subr.mxu0 0.0
    %1518 = vmatpush1.msra.mxu0 0.0
    %1519 = vmatprep.subr.mxu0 0.0
    %1520 = vmatpush1.msra.mxu0 0.0
    %1521 = vmatprep.subr.mxu0 0.0
    %1522 = vmatpush1.msra.mxu0 0.0
    %1523 = vmatprep.subr.mxu0 0.0
    %1524 = vmatpush1.msra.mxu0 0.0
    %1525 = vmatprep.subr.mxu0 0.0
    %1526 = vmatpush1.msra.mxu0 0.0
    %1527 = vmatprep.subr.mxu0 0.0
    %1528 = vmatpush1.msra.mxu0 0.0
    %1529 = vmatprep.subr.mxu0 0.0
    %1530 = vmatpush1.msra.mxu0 0.0
    %1531 = vmatprep.subr.mxu0 0.0
    %1532 = vmatpush1.msra.mxu0 0.0
    %1533 = vmatprep.subr.mxu0 0.0
    %1534 = vmatpush1.msra.mxu0 0.0
    %1535 = vmatprep.subr.mxu0 0.0
    %1536 = vmatpush1.msra.mxu0 0.0
    %1537 = vmatprep.subr.mxu0 0.0
    %1538 = vmatpush1.msra.mxu0 0.0
    %1539 = vmatprep.subr.mxu0 0.0
    %1540 = vmatpush1.msra.mxu0 0.0
    %1541 = vmatprep.subr.mxu0 0.0
    %1542 = vmatpush1.msra.mxu0 0.0
    %1543 = vmatprep.subr.mxu0 0.0
    %1544 = vmatpush1.msra.mxu0 0.0
    %1545 = vmatprep.subr.mxu0 0.0
    %1546 = vmatpush1.msra.mxu0 0.0
    %1547 = vmatprep.subr.mxu0 0.0
    %1548 = vmatpush1.msra.mxu0 0.0
    %1549 = vmatprep.subr.mxu0 0.0
    %1550 = vmatpush1.msra.mxu0 0.0
    %1551 = vmatprep.mubr.f32.mxu0 0.0
    %1552 = vmatmul.mubr.f32.gmra.mrb[0].mxu0 %v1485
    %v1553 = vpop.f32.mrb[0].mxu0
    %v1554 = vadd.f32 0.0, %v1553
    %v1555 = vpop.f32.mrb[0].mxu0
    %1556 = vdwg.mxu0
    %1561 = vrot.lane.b32.xlu0 %v1181, 64
    %v1562 = vpop.permute.xlu0 %1561
    %1563 = vrot.lane.b32.xlu0 %v1182, 64
    %v1564 = vpop.permute.xlu0 %1563
    %1565 = vrot.lane.b32.xlu0 %v1183, 64
    %v1566 = vpop.permute.xlu0 %1565
    %1567 = vrot.lane.b32.xlu0 %v1184, 64
    %v1568 = vpop.permute.xlu0 %1567
    %v1574 = vsel %vm135, %v1467, 0
    %1576 = vmatprep.subr.mxu0 0.0
    %1577 = vmatpush1.msra.mxu0 %v1562
    %1578 = vmatprep.subr.mxu0 0.0
    %1579 = vmatpush1.msra.mxu0 %v1564
    %1580 = vmatprep.subr.mxu0 0.0
    %1581 = vmatpush1.msra.mxu0 %v1566
    %1582 = vmatprep.subr.mxu0 0.0
    %1583 = vmatpush1.msra.mxu0 %v1568
    %1584 = vmatprep.subr.mxu0 0.0
    %1585 = vmatpush1.msra.mxu0 0.0
    %1586 = vmatprep.subr.mxu0 0.0
    %1587 = vmatpush1.msra.mxu0 0.0
    %1588 = vmatprep.subr.mxu0 0.0
    %1589 = vmatpush1.msra.mxu0 0.0
    %1590 = vmatprep.subr.mxu0 0.0
    %1591 = vmatpush1.msra.mxu0 0.0
    %1592 = vmatprep.subr.mxu0 0.0
    %1593 = vmatpush1.msra.mxu0 0.0
    %1594 = vmatprep.subr.mxu0 0.0
    %1595 = vmatpush1.msra.mxu0 0.0
    %1596 = vmatprep.subr.mxu0 0.0
    %1597 = vmatpush1.msra.mxu0 0.0
    %1598 = vmatprep.subr.mxu0 0.0
    %1599 = vmatpush1.msra.mxu0 0.0
    %1600 = vmatprep.subr.mxu0 0.0
    %1601 = vmatpush1.msra.mxu0 0.0
    %1602 = vmatprep.subr.mxu0 0.0
    %1603 = vmatpush1.msra.mxu0 0.0
    %1604 = vmatprep.subr.mxu0 0.0
    %1605 = vmatpush1.msra.mxu0 0.0
    %1606 = vmatprep.subr.mxu0 0.0
    %1607 = vmatpush1.msra.mxu0 0.0
    %1608 = vmatprep.subr.mxu0 0.0
    %1609 = vmatpush1.msra.mxu0 0.0
    %1610 = vmatprep.subr.mxu0 0.0
    %1611 = vmatpush1.msra.mxu0 0.0
    %1612 = vmatprep.subr.mxu0 0.0
    %1613 = vmatpush1.msra.mxu0 0.0
    %1614 = vmatprep.subr.mxu0 0.0
    %1615 = vmatpush1.msra.mxu0 0.0
    %1616 = vmatprep.subr.mxu0 0.0
    %1617 = vmatpush1.msra.mxu0 0.0
    %1618 = vmatprep.subr.mxu0 0.0
    %1619 = vmatpush1.msra.mxu0 0.0
    %1620 = vmatprep.subr.mxu0 0.0
    %1621 = vmatpush1.msra.mxu0 0.0
    %1622 = vmatprep.subr.mxu0 0.0
    %1623 = vmatpush1.msra.mxu0 0.0
    %1624 = vmatprep.subr.mxu0 0.0
    %1625 = vmatpush1.msra.mxu0 0.0
    %1626 = vmatprep.subr.mxu0 0.0
    %1627 = vmatpush1.msra.mxu0 0.0
    %1628 = vmatprep.subr.mxu0 0.0
    %1629 = vmatpush1.msra.mxu0 0.0
    %1630 = vmatprep.subr.mxu0 0.0
    %1631 = vmatpush1.msra.mxu0 0.0
    %1632 = vmatprep.subr.mxu0 0.0
    %1633 = vmatpush1.msra.mxu0 0.0
    %1634 = vmatprep.subr.mxu0 0.0
    %1635 = vmatpush1.msra.mxu0 0.0
    %1636 = vmatprep.subr.mxu0 0.0
    %1637 = vmatpush1.msra.mxu0 0.0
    %1638 = vmatprep.subr.mxu0 0.0
    %1639 = vmatpush1.msra.mxu0 0.0
    %1640 = vmatprep.mubr.f32.mxu0 0.0
    %1641 = vmatmul.mubr.f32.gmra.mrb[0].mxu0 %v1574
    %v1642 = vpop.f32.mrb[0].mxu0
    %v1643 = vadd.f32 0.0, %v1642
    %v1644 = vpop.f32.mrb[0].mxu0
    %1645 = vdwg.mxu0
    %v1646 = vlaneseq
    %v1647 = vshrl.u32 %v1646, 7
    %v1648 = vsub.s32 2, %v1647
    %v1649 = vrot.slane %v1083, %v1648
    %v1651 = vsel %vm135, %v1554, 0
    %v1654 = vsel %vm135, %v1643, 0
    %1656 = vmatprep.subr.mxu0 0.0
    %1657 = vmatpush1.msra.mxu0 %v1079
    %1658 = vmatprep.subr.mxu0 0.0
    %1659 = vmatpush1.msra.mxu0 %v1080
    %1660 = vmatprep.subr.mxu0 0.0
    %1661 = vmatpush1.msra.mxu0 %v1081
    %1662 = vmatprep.subr.mxu0 0.0
    %1663 = vmatpush1.msra.mxu0 %v1082
    %1664 = vmatprep.subr.mxu0 0.0
    %1665 = vmatpush1.msra.mxu0 0.0
    %1666 = vmatprep.subr.mxu0 0.0
    %1667 = vmatpush1.msra.mxu0 0.0
    %1668 = vmatprep.subr.mxu0 0.0
    %1669 = vmatpush1.msra.mxu0 0.0
    %1670 = vmatprep.subr.mxu0 0.0
    %1671 = vmatpush1.msra.mxu0 0.0
    %1672 = vmatprep.subr.mxu0 0.0
    %1673 = vmatpush1.msra.mxu0 0.0
    %1674 = vmatprep.subr.mxu0 0.0
    %1675 = vmatpush1.msra.mxu0 0.0
    %1676 = vmatprep.subr.mxu0 0.0
    %1677 = vmatpush1.msra.mxu0 0.0
    %1678 = vmatprep.subr.mxu0 0.0
    %1679 = vmatpush1.msra.mxu0 0.0
    %1680 = vmatprep.subr.mxu0 0.0
    %1681 = vmatpush1.msra.mxu0 0.0
    %1682 = vmatprep.subr.mxu0 0.0
    %1683 = vmatpush1.msra.mxu0 0.0
    %1684 = vmatprep.subr.mxu0 0.0
    %1685 = vmatpush1.msra.mxu0 0.0
    %1686 = vmatprep.subr.mxu0 0.0
    %1687 = vmatpush1.msra.mxu0 0.0
    %1688 = vmatprep.subr.mxu0 0.0
    %1689 = vmatpush1.msra.mxu0 0.0
    %1690 = vmatprep.subr.mxu0 0.0
    %1691 = vmatpush1.msra.mxu0 0.0
    %1692 = vmatprep.subr.mxu0 0.0
    %1693 = vmatpush1.msra.mxu0 0.0
    %1694 = vmatprep.subr.mxu0 0.0
    %1695 = vmatpush1.msra.mxu0 0.0
    %1696 = vmatprep.subr.mxu0 0.0
    %1697 = vmatpush1.msra.mxu0 0.0
    %1698 = vmatprep.subr.mxu0 0.0
    %1699 = vmatpush1.msra.mxu0 0.0
    %1700 = vmatprep.subr.mxu0 0.0
    %1701 = vmatpush1.msra.mxu0 0.0
    %1702 = vmatprep.subr.mxu0 0.0
    %1703 = vmatpush1.msra.mxu0 0.0
    %1704 = vmatprep.subr.mxu0 0.0
    %1705 = vmatpush1.msra.mxu0 0.0
    %1706 = vmatprep.subr.mxu0 0.0
    %1707 = vmatpush1.msra.mxu0 0.0
    %1708 = vmatprep.subr.mxu0 0.0
    %1709 = vmatpush1.msra.mxu0 0.0
    %1710 = vmatprep.subr.mxu0 0.0
    %1711 = vmatpush1.msra.mxu0 0.0
    %1712 = vmatprep.subr.mxu0 0.0
    %1713 = vmatpush1.msra.mxu0 0.0
    %1714 = vmatprep.subr.mxu0 0.0
    %1715 = vmatpush1.msra.mxu0 0.0
    %1716 = vmatprep.subr.mxu0 0.0
    %1717 = vmatpush1.msra.mxu0 0.0
    %1718 = vmatprep.subr.mxu0 0.0
    %1719 = vmatpush1.msra.mxu0 0.0
    %1720 = vmatprep.mubr.f32.mxu0 0.0
    %1721 = vmatmul.mubr.f32.gmra.mrb[0].mxu0 %v1651
    %v1722 = vpop.f32.mrb[0].mxu0
    %v1723 = vadd.f32 %v1649, %v1722
    %v1724 = vpop.f32.mrb[0].mxu0
    %1725 = vmatprep.mubr.f32.mxu0 0.0
    %1726 = vmatmul.mubr.f32.gmra.mrb[0].mxu0 %v1654
    %v1727 = vpop.f32.mrb[0].mxu0
    %v1728 = vadd.f32 %v1649, %v1727
    %v1729 = vpop.f32.mrb[0].mxu0
    %1730 = vdwg.mxu0
    %v1731 = vadd.f32 %v1068, %v1723
    %v1732 = vadd.f32 %v1069, %v1728
    %v1733 = vsel %vm135, %v1731, 0.0
    %1734 = vadd.xlane.f32.xlu0 %v1733
    %v1735 = vpop.xlane.xlu0 %1734
    %v1736 = vsel %vm135, %v1732, 0.0
    %1737 = vadd.xlane.f32.xlu0 %v1736
    %v1738 = vpop.xlane.xlu0 %1737
    %v1739 = vmul.f32 %v1735, %v815
    %v1740 = vmul.f32 %v1738, %v815
    %v1741 = vsub.f32 %v1731, %v1739
    %v1742 = vsub.f32 %v1732, %v1740
    %v1743 = vmul.f32 %v1741, %v1741
    %v1744 = vmul.f32 %v1742, %v1742
    %v1745 = vsel %vm135, %v1743, 0.0
    %1746 = vadd.xlane.f32.xlu0 %v1745
    %v1747 = vpop.xlane.xlu0 %1746
    %v1748 = vsel %vm135, %v1744, 0.0
    %1749 = vadd.xlane.f32.xlu0 %v1748
    %v1750 = vpop.xlane.xlu0 %1749
    %v1751 = vmul.f32 %v1747, %v815
    %v1752 = vmul.f32 %v1750, %v815
    %v1753 = vadd.f32 %v1751, 1e-05
    %v1754 = vadd.f32 %v1752, 1e-05
    %v1755 = vrsqrt.pop %v1753
    %v1756 = vrsqrt.pop %v1754
    %v1757 = vmul.f32 %v1741, %v1755
    %v1758 = vmul.f32 %v1742, %v1756
    %v1759 = vlaneseq
    %v1760 = vshrl.u32 %v1759, 7
    %v1761 = vsub.s32 3, %v1760
    %v1762 = vrot.slane %v1083, %v1761
    %v1763 = vmul.f32 %v1757, %v1762
    %v1764 = vmul.f32 %v1758, %v1762
    %v1765 = vlaneseq
    %v1766 = vshrl.u32 %v1765, 7
    %v1767 = vsub.s32 4, %v1766
    %v1768 = vrot.slane %v1083, %v1767
    %v1769 = vadd.f32 %v1763, %v1768
    %v1770 = vadd.f32 %v1764, %v1768
    %v1771 = vlaneseq
    %v1772 = vshrl.u32 %v1771, 7
    %v1773 = vsub.s32 1, %v1772
    %v1774 = vrot.slane %v1083, %v1773
    %v1776 = vsel %vm135, %v1769, 0
    %v1779 = vsel %vm135, %v1770, 0
    %1781 = vmatprep.subr.mxu0 0.0
    %1782 = vmatpush1.msra.mxu0 %v1075
    %1783 = vmatprep.subr.mxu0 0.0
    %1784 = vmatpush1.msra.mxu0 %v1076
    %1785 = vmatprep.subr.mxu0 0.0
    %1786 = vmatpush1.msra.mxu0 %v1077
    %1787 = vmatprep.subr.mxu0 0.0
    %1788 = vmatpush1.msra.mxu0 %v1078
    %1789 = vmatprep.subr.mxu0 0.0
    %1790 = vmatpush1.msra.mxu0 0.0
    %1791 = vmatprep.subr.mxu0 0.0
    %1792 = vmatpush1.msra.mxu0 0.0
    %1793 = vmatprep.subr.mxu0 0.0
    %1794 = vmatpush1.msra.mxu0 0.0
    %1795 = vmatprep.subr.mxu0 0.0
    %1796 = vmatpush1.msra.mxu0 0.0
    %1797 = vmatprep.subr.mxu0 0.0
    %1798 = vmatpush1.msra.mxu0 0.0
    %1799 = vmatprep.subr.mxu0 0.0
    %1800 = vmatpush1.msra.mxu0 0.0
    %1801 = vmatprep.subr.mxu0 0.0
    %1802 = vmatpush1.msra.mxu0 0.0
    %1803 = vmatprep.subr.mxu0 0.0
    %1804 = vmatpush1.msra.mxu0 0.0
    %1805 = vmatprep.subr.mxu0 0.0
    %1806 = vmatpush1.msra.mxu0 0.0
    %1807 = vmatprep.subr.mxu0 0.0
    %1808 = vmatpush1.msra.mxu0 0.0
    %1809 = vmatprep.subr.mxu0 0.0
    %1810 = vmatpush1.msra.mxu0 0.0
    %1811 = vmatprep.subr.mxu0 0.0
    %1812 = vmatpush1.msra.mxu0 0.0
    %1813 = vmatprep.subr.mxu0 0.0
    %1814 = vmatpush1.msra.mxu0 0.0
    %1815 = vmatprep.subr.mxu0 0.0
    %1816 = vmatpush1.msra.mxu0 0.0
    %1817 = vmatprep.subr.mxu0 0.0
    %1818 = vmatpush1.msra.mxu0 0.0
    %1819 = vmatprep.subr.mxu0 0.0
    %1820 = vmatpush1.msra.mxu0 0.0
    %1821 = vmatprep.subr.mxu0 0.0
    %1822 = vmatpush1.msra.mxu0 0.0
    %1823 = vmatprep.subr.mxu0 0.0
    %1824 = vmatpush1.msra.mxu0 0.0
    %1825 = vmatprep.subr.mxu0 0.0
    %1826 = vmatpush1.msra.mxu0 0.0
    %1827 = vmatprep.subr.mxu0 0.0
    %1828 = vmatpush1.msra.mxu0 0.0
    %1829 = vmatprep.subr.mxu0 0.0
    %1830 = vmatpush1.msra.mxu0 0.0
    %1831 = vmatprep.subr.mxu0 0.0
    %1832 = vmatpush1.msra.mxu0 0.0
    %1833 = vmatprep.subr.mxu0 0.0
    %1834 = vmatpush1.msra.mxu0 0.0
    %1835 = vmatprep.subr.mxu0 0.0
    %1836 = vmatpush1.msra.mxu0 0.0
    %1837 = vmatprep.subr.mxu0 0.0
    %1838 = vmatpush1.msra.mxu0 0.0
    %1839 = vmatprep.subr.mxu0 0.0
    %1840 = vmatpush1.msra.mxu0 0.0
    %1841 = vmatprep.subr.mxu0 0.0
    %1842 = vmatpush1.msra.mxu0 0.0
    %1843 = vmatprep.subr.mxu0 0.0
    %1844 = vmatpush1.msra.mxu0 0.0
    %1845 = vmatprep.mubr.f32.mxu0 0.0
    %1846 = vmatmul.mubr.f32.gmra.mrb[0].mxu0 %v1776
    %v1847 = vpop.f32.mrb[0].mxu0
    %v1848 = vadd.f32 %v1774, %v1847
    %v1849 = vpop.f32.mrb[0].mxu0
    %1850 = vmatprep.mubr.f32.mxu0 0.0
    %1851 = vmatmul.mubr.f32.gmra.mrb[0].mxu0 %v1779
    %v1852 = vpop.f32.mrb[0].mxu0
    %v1853 = vadd.f32 %v1774, %v1852
    %v1854 = vpop.f32.mrb[0].mxu0
    %1855 = vdwg.mxu0
    %v1856 = vmax.f32 %v1848, 0.0
    %v1857 = vmax.f32 %v1853, 0.0
    %s1858 = scalar_lea.vmem %s4, 128
    %v1859 = vld [vmem:[%s1858] sm:$0xff]
    %v1860 = vld [vmem:[%s1858 + $0x8] sm:$0xff]
    %v1861 = vld [vmem:[%s1858 + $0x10] sm:$0xff]
    %v1862 = vld [vmem:[%s1858 + $0x18] sm:$0xff]
    %v1863 = vld [vmem:[%s1858 + $0x20] sm:$0xff]
    %v1864 = vld [vmem:[%s1858 + $0x28] sm:$0xff]
    %v1865 = vld [vmem:[%s1858 + $0x30] sm:$0xff]
    %v1866 = vld [vmem:[%s1858 + $0x38] sm:$0xff]
    %v1867 = vld [vmem:[%s1858 + $0x40] sm:$0xff]
    %v1868 = vld [vmem:[%s1858 + $0x48] sm:$0xff]
    %v1869 = vld [vmem:[%s1858 + $0x50] sm:$0xff]
    %v1870 = vld [vmem:[%s1858 + $0x58] sm:$0xff]
    %v1871 = vld [vmem:[%s1858 + $0x60] sm:$0xff]
    %v1872 = vld [vmem:[%s1858 + $0x68] sm:$0xff]
    %v1873 = vld [vmem:[%s1858 + $0x70] sm:$0xff]
    %v1874 = vld [vmem:[%s1858 + $0x78] sm:$0xff]
    %v1875 = vlaneseq
    %v1876 = vshrl.u32 %v1875, 7
    %v1877 = vsub.s32 5, %v1876
    %v1878 = vrot.slane %v1083, %v1877
    %1879 = vmatprep.subr.mxu0 0.0
    %1880 = vmatpush1.msra.mxu0 %v1859
    %1881 = vmatprep.subr.mxu0 0.0
    %1882 = vmatpush1.msra.mxu0 %v1860
    %1883 = vmatprep.subr.mxu0 0.0
    %1884 = vmatpush1.msra.mxu0 %v1861
    %1885 = vmatprep.subr.mxu0 0.0
    %1886 = vmatpush1.msra.mxu0 %v1862
    %1887 = vmatprep.subr.mxu0 0.0
    %1888 = vmatpush1.msra.mxu0 %v1863
    %1889 = vmatprep.subr.mxu0 0.0
    %1890 = vmatpush1.msra.mxu0 %v1864
    %1891 = vmatprep.subr.mxu0 0.0
    %1892 = vmatpush1.msra.mxu0 %v1865
    %1893 = vmatprep.subr.mxu0 0.0
    %1894 = vmatpush1.msra.mxu0 %v1866
    %1895 = vmatprep.subr.mxu0 0.0
    %1896 = vmatpush1.msra.mxu0 %v1867
    %1897 = vmatprep.subr.mxu0 0.0
    %1898 = vmatpush1.msra.mxu0 %v1868
    %1899 = vmatprep.subr.mxu0 0.0
    %1900 = vmatpush1.msra.mxu0 %v1869
    %1901 = vmatprep.subr.mxu0 0.0
    %1902 = vmatpush1.msra.mxu0 %v1870
    %1903 = vmatprep.subr.mxu0 0.0
    %1904 = vmatpush1.msra.mxu0 %v1871
    %1905 = vmatprep.subr.mxu0 0.0
    %1906 = vmatpush1.msra.mxu0 %v1872
    %1907 = vmatprep.subr.mxu0 0.0
    %1908 = vmatpush1.msra.mxu0 %v1873
    %1909 = vmatprep.subr.mxu0 0.0
    %1910 = vmatpush1.msra.mxu0 %v1874
    %1911 = vmatprep.subr.mxu0 0.0
    %1912 = vmatpush1.msra.mxu0 0.0
    %1913 = vmatprep.subr.mxu0 0.0
    %1914 = vmatpush1.msra.mxu0 0.0
    %1915 = vmatprep.subr.mxu0 0.0
    %1916 = vmatpush1.msra.mxu0 0.0
    %1917 = vmatprep.subr.mxu0 0.0
    %1918 = vmatpush1.msra.mxu0 0.0
    %1919 = vmatprep.subr.mxu0 0.0
    %1920 = vmatpush1.msra.mxu0 0.0
    %1921 = vmatprep.subr.mxu0 0.0
    %1922 = vmatpush1.msra.mxu0 0.0
    %1923 = vmatprep.subr.mxu0 0.0
    %1924 = vmatpush1.msra.mxu0 0.0
    %1925 = vmatprep.subr.mxu0 0.0
    %1926 = vmatpush1.msra.mxu0 0.0
    %1927 = vmatprep.subr.mxu0 0.0
    %1928 = vmatpush1.msra.mxu0 0.0
    %1929 = vmatprep.subr.mxu0 0.0
    %1930 = vmatpush1.msra.mxu0 0.0
    %1931 = vmatprep.subr.mxu0 0.0
    %1932 = vmatpush1.msra.mxu0 0.0
    %1933 = vmatprep.subr.mxu0 0.0
    %1934 = vmatpush1.msra.mxu0 0.0
    %1935 = vmatprep.subr.mxu0 0.0
    %1936 = vmatpush1.msra.mxu0 0.0
    %1937 = vmatprep.subr.mxu0 0.0
    %1938 = vmatpush1.msra.mxu0 0.0
    %1939 = vmatprep.subr.mxu0 0.0
    %1940 = vmatpush1.msra.mxu0 0.0
    %1941 = vmatprep.subr.mxu0 0.0
    %1942 = vmatpush1.msra.mxu0 0.0
    %1943 = vmatprep.mubr.f32.mxu0 0.0
    %1944 = vmatmul.mubr.f32.gmra.mrb[0].mxu0 %v1856
    %v1945 = vpop.f32.mrb[0].mxu0
    %v1946 = vadd.f32 %v1878, %v1945
    %v1947 = vpop.f32.mrb[0].mxu0
    %1948 = vmatprep.mubr.f32.mxu0 0.0
    %1949 = vmatmul.mubr.f32.gmra.mrb[0].mxu0 %v1857
    %v1950 = vpop.f32.mrb[0].mxu0
    %v1951 = vadd.f32 %v1878, %v1950
    %v1952 = vpop.f32.mrb[0].mxu0
    %1953 = vdwg.mxu0
    %v1954 = vadd.f32 %v1769, %v1946
    %v1955 = vadd.f32 %v1770, %v1951
    %v1956 = vsel %vm135, %v1954, 0.0
    %1957 = vadd.xlane.f32.xlu0 %v1956
    %v1958 = vpop.xlane.xlu0 %1957
    %v1959 = vsel %vm135, %v1955, 0.0
    %1960 = vadd.xlane.f32.xlu0 %v1959
    %v1961 = vpop.xlane.xlu0 %1960
    %v1962 = vmul.f32 %v1958, %v815
    %v1963 = vmul.f32 %v1961, %v815
    %v1964 = vsub.f32 %v1954, %v1962
    %v1965 = vsub.f32 %v1955, %v1963
    %v1966 = vmul.f32 %v1964, %v1964
    %v1967 = vmul.f32 %v1965, %v1965
    %v1968 = vsel %vm135, %v1966, 0.0
    %1969 = vadd.xlane.f32.xlu0 %v1968
    %v1970 = vpop.xlane.xlu0 %1969
    %v1971 = vsel %vm135, %v1967, 0.0
    %1972 = vadd.xlane.f32.xlu0 %v1971
    %v1973 = vpop.xlane.xlu0 %1972
    %v1974 = vmul.f32 %v1970, %v815
    %v1975 = vmul.f32 %v1973, %v815
    %v1976 = vadd.f32 %v1974, 1e-05
    %v1977 = vadd.f32 %v1975, 1e-05
    %v1978 = vrsqrt.pop %v1976
    %v1979 = vrsqrt.pop %v1977
    %v1980 = vmul.f32 %v1964, %v1978
    %v1981 = vmul.f32 %v1965, %v1979
    %v1982 = vlaneseq
    %v1983 = vshrl.u32 %v1982, 7
    %v1984 = vsub.s32 6, %v1983
    %v1985 = vrot.slane %v1083, %v1984
    %v1986 = vmul.f32 %v1980, %v1985
    %v1987 = vmul.f32 %v1981, %v1985
    %v1988 = vlaneseq
    %v1989 = vshrl.u32 %v1988, 7
    %v1990 = vsub.s32 7, %v1989
    %v1991 = vrot.slane %v1083, %v1990
    %v1992 = vadd.f32 %v1986, %v1991
    %v1993 = vadd.f32 %v1987, %v1991
    %v1996 = vrot.slane %v1993, 7
    %vm1997 = vcmask 1041409
    %v1998 = vsel %vm1997, %v1996, %v1992
    %v2000 = vrot.slane %v1992, 1
    %v2001 = vsel %vm1997, %v1993, %v2000
    %2002 = vrot.lane.b32.xlu0 %v2001, 32
    %v2003 = vpop.permute.xlu0 %2002
    %v2005 = vrot.slane %v1992, 2
    %v2006 = vrot.slane %v1993, 1
    %v2007 = vsel %vm1997, %v2006, %v2005
    %2008 = vrot.lane.b32.xlu0 %v2007, 64
    %v2009 = vpop.permute.xlu0 %2008
    %v2011 = vrot.slane %v1992, 3
    %v2012 = vrot.slane %v1993, 2
    %v2013 = vsel %vm1997, %v2012, %v2011
    %2014 = vrot.lane.b32.xlu0 %v2013, 96
    %v2015 = vpop.permute.xlu0 %2014
    %v2017 = vrot.slane %v1992, 4
    %v2018 = vrot.slane %v1993, 3
    %v2019 = vsel %vm1997, %v2018, %v2017
    %v2021 = vrot.slane %v1992, 5
    %v2022 = vrot.slane %v1993, 4
    %v2023 = vsel %vm1997, %v2022, %v2021
    %2024 = vrot.lane.b32.xlu0 %v2023, 32
    %v2025 = vpop.permute.xlu0 %2024
    %v2027 = vrot.slane %v1992, 6
    %v2028 = vrot.slane %v1993, 5
    %v2029 = vsel %vm1997, %v2028, %v2027
    %2030 = vrot.lane.b32.xlu0 %v2029, 64
    %v2031 = vpop.permute.xlu0 %2030
    %v2033 = vrot.slane %v1992, 7
    %v2034 = vrot.slane %v1993, 6
    %v2035 = vsel %vm1997, %v2034, %v2033
    %2036 = vrot.lane.b32.xlu0 %v2035, 96
    %v2037 = vpop.permute.xlu0 %2036
    %v2039 = vsel %vm135, %v1998, %v2003
    %vm2040 = vcmask 523264
    %v2041 = vsel %vm2040, %v2039, %v2009
    %vm2042 = vcmask 785408
    %v2043 = vsel %vm2042, %v2041, %v2015
    %v2044 = vsel %vm135, %v2019, %v2025
    %v2045 = vsel %vm2040, %v2044, %v2031
    %v2046 = vsel %vm2042, %v2045, %v2037
    %v2049 = vcombine.low %v2043, %v2046
    %v2051 = vunpack.c.l.s4 1983009808
    %v2052 = vunpack.c.0.s8 %v2051
    %v2053 = vlaneseq
    %v2054 = vshrl.u32 %v2053, 7
    %v2055 = vsub.s32 %v2052, %v2054
    %v2056 = vrot.slane %v2049, %v2055
    %2058 = vst [vmem:[#allocation2] sm:$0xf] %v2056
    // Predicated region
    $region22: #{tpu_custom_call.1} parent=1 // pred_check
      _
    $region23: #{tpu_custom_call.1} parent=1 // pred_check_branch
      %2060 = sbr.rel (0) target = $region25
    $region24: #{tpu_custom_call.1} parent=1 // pred_region
      %s2062 = ssub.s32 64, 64
      %2063 = vsyncadd [#allocation3], %s2062
      %s2065 = sshll.u32 [#allocation2], 4
      %s2066 = int_to_ptr.vmem [resolvable:$true] %s2065
      %2068 = dma.vmem_to_hbm [thread:$0]  %s2066, 64, %s5, [#allocation3]
    $region25: #{tpu_custom_call.1} parent=1 // pred_fallthru
      _
    // Predicated region
    $region26: #{tpu_custom_call.1} parent=1 // pred_check
      _
    $region27: #{tpu_custom_call.1} parent=1 // pred_check_branch
      %2070 = sbr.rel (0) target = $region29
    $region28: #{tpu_custom_call.1} parent=1 // pred_region
      %2071 = dma.done [#allocation3], 64
    $region29: #{tpu_custom_call.1} parent=1 // pred_fallthru
      _
    %2072 = vsyncpa [#allocation3], 1

</llo_original>
